<compile_context>
chip_gen: v7x
topology: tpu7x:2x2x1
jax: 0.10.0
libtpu: 0.0.40
codegen_flags: <defaults>
</compile_context>

<pallas_src>
import math

import jax
import jax.numpy as jnp
from jax.experimental import pallas as pl
from jax.experimental.pallas import tpu as pltpu

INPUT_FEAT = 72     # raw feature size consumed by fcin (hard-coded 72 in the module)
INPUT_SIZE = 16     # self.input_size
HIDDEN = 32         # self.hidden_size
RESIDUAL = True


def enc_dec_kernel(x_ref, tgt0_ref,
                   fcin_w_ref, fcin_b_ref,
                   w_ih_ref, w_hh_enc_ref, w_hh_pad_ref, w_full_ref,
                   b_gates_ref, b_gates2_ref, b_hn_ref,
                   lin_w_ref, lin_b_ref,
                   enc_ref, dec_ref,
                   h_scr):
    H, F = HIDDEN, INPUT_SIZE
    B = tgt0_ref.shape[0]
    T_in = x_ref.shape[0] // B
    n_dec = dec_ref.shape[0] // B

    fcin_w = fcin_w_ref[...]        # (72, F)          f32
    fcin_b = fcin_b_ref[...]        # (1, F)           f32
    w_ih = w_ih_ref[...]            # (F, 3H)          f32  (off-chain matmuls)
    w_hh_enc = w_hh_enc_ref[...]    # (H, 3H)          bf16 (encoder serial matmul)
    w_hh_pad = w_hh_pad_ref[...]    # (H, 4H)          bf16 [W_hh_rz | 0 | W_hh_n]
    w_full = w_full_ref[...]        # (H, 4H+F)        bf16 fused decoder step matrix
    lin_w = lin_w_ref[...]          # (H, F)           f32
    b_gates = b_gates_ref[...]      # (1, 3H): [b_ih_rz + b_hh_rz, b_ih_n]
    b_gates2 = b_gates2_ref[...]    # (1, 3H): b_gates + lin_b @ W_ih

    # Hoisted broadcasts (JAX does not CSE broadcast_in_dim inside loops).
    b_hn_b = jnp.broadcast_to(b_hn_ref[...], (B, H))   # b_hh n-gate, stays inside r*(...)
    lin_b_b = jnp.broadcast_to(lin_b_ref[...], (B, F))

    # ---------------- encoder ----------------
    # Batched input-side precompute (off the serial path):
    #   x_fc = fcin(x) for all frames; gi = x_fc @ W_ih + folded biases.
    x_fc_all = jnp.dot(x_ref[...], fcin_w,
                       preferred_element_type=jnp.float32) + fcin_b          # (T_in*B, F)
    gi_all = jnp.dot(x_fc_all, w_ih,
                     preferred_element_type=jnp.float32) + b_gates           # (T_in*B, 3H)

    h = jnp.zeros((B, H), jnp.float32)
    for t in range(T_in):                       # fully unrolled; only h @ W_hh is serial
        gi_t = gi_all[t * B:(t + 1) * B, :]
        if t == 0:
            # h == 0  =>  gh == 0 : skip the matmul on the chain.
            rz = jax.nn.sigmoid(gi_t[:, :2 * H])
            r = rz[:, :H]
            z = rz[:, H:]
            n = jnp.tanh(gi_t[:, 2 * H:] + r * b_hn_b)
            h = (1.0 - z) * n
        else:
            gh = jnp.dot(h.astype(jnp.bfloat16), w_hh_enc,
                         preferred_element_type=jnp.float32)                 # (B, 3H)
            rz = jax.nn.sigmoid(gi_t[:, :2 * H] + gh[:, :2 * H])
            r = rz[:, :H]
            z = rz[:, H:]
            n = jnp.tanh(gi_t[:, 2 * H:] + r * (gh[:, 2 * H:] + b_hn_b))
            h = (1.0 - z) * n + z * h
        h_scr[t * B:(t + 1) * B, :] = h         # per-step scratch write (overlaps recurrence)

    # Deferred, batched output projection + residual; time-major store (no repack).
    pred_all = jnp.dot(h_scr[...], lin_w,
                       preferred_element_type=jnp.float32) + lin_b_ref[...]  # dropout(p=0)=id
    if RESIDUAL:
        pred_all = pred_all + x_fc_all                                       # pred_pre = rnn input
    enc_ref[...] = pred_all.astype(enc_ref.dtype)                            # (T_in*B, F)

    # ---------------- decoder (autoregressive) ----------------
    # One fused serial matmul per step: m_k = h_k @ W_full gives both pred_k
    # (last F cols) and the h-side of step k+1's gates (first 4H cols).
    inp = jnp.dot(tgt0_ref[...], fcin_w,
                  preferred_element_type=jnp.float32) + fcin_b               # fcin(target[0])
    a = jnp.dot(inp, w_ih, preferred_element_type=jnp.float32) + b_gates     # input-side gates, k=0
    mg = jnp.dot(h.astype(jnp.bfloat16), w_hh_pad,
                 preferred_element_type=jnp.float32)                         # h-side gates,  k=0

    for k in range(n_dec):                      # fully unrolled
        rz = jax.nn.sigmoid(a[:, :2 * H] + mg[:, :2 * H])
        r = rz[:, :H]
        z = rz[:, H:]
        n = jnp.tanh(a[:, 2 * H:] + mg[:, 2 * H:3 * H] + r * (mg[:, 3 * H:] + b_hn_b))
        h = (1.0 - z) * n + z * h
        m = jnp.dot(h.astype(jnp.bfloat16), w_full,
                    preferred_element_type=jnp.float32)                      # (B, 4H+F)
        pred = m[:, 4 * H:] + lin_b_b + inp                                  # residual folded
        dec_ref[k * B:(k + 1) * B, :] = pred.astype(dec_ref.dtype)           # per-step store
        if k + 1 < n_dec:
            # Next step's input-side gate term: depends only on inp_k, off the chain.
            a = jnp.dot(inp, w_ih, preferred_element_type=jnp.float32) + b_gates2
            mg = m[:, :4 * H]
            inp = pred
    # TODO(synk): std_mask / veloc / pos_embed branches not enabled in this config.


@jax.jit
def encoder_decoder(x, tgt, params):
    """x: (T_in, B, 72); tgt: (T_tgt, B, 72). Returns (enc (T_in,B,16), dec (T_tgt-1,B,16))."""
    T_in, B, feat = x.shape
    T_tgt = tgt.shape[0]
    n_dec = T_tgt - 1
    H, F = HIDDEN, INPUT_SIZE

    w_ih = params['w_ih_t']          # (F, 3H)
    w_hh = params['w_hh_t']          # (H, 3H)
    b_ih = params['b_ih']            # (1, 3H)
    b_hh = params['b_hh']            # (1, 3H)
    lin_w = params['lin_w_t']        # (H, F)
    lin_b = params['lin_b']          # (1, F)

    # Encoder recurrent weight as bf16 MXU operand (serial-chain matmul).
    w_hh_bf = w_hh.astype(jnp.bfloat16)

    # Decoder step-0 h-side matrix: [W_hh_rz | 0 | W_hh_n]  (gi_n h-side is zero at k=0).
    w_hh_pad = jnp.concatenate(
        [w_hh[:, :2 * H], jnp.zeros((H, H), jnp.float32), w_hh[:, 2 * H:]], axis=1)
    w_hh_pad_bf = w_hh_pad.astype(jnp.bfloat16)

    # Fused decoder per-step matrix (one serial matmul per step):
    #   cols [0:2H]  = lin_w @ W_ih_rz + W_hh_rz   (rz gates, h-side, residual folded)
    #   cols [2H:3H] = lin_w @ W_ih_n              (gi_n, h-side)
    #   cols [3H:4H] = W_hh_n                      (gh_n, h-side)
    #   cols [4H:]   = lin_w                       (output projection for pred_k)
    lw_ih = lin_w @ w_ih             # (H, 3H)
    w_full = jnp.concatenate(
        [lw_ih[:, :2 * H] + w_hh[:, :2 * H], lw_ih[:, 2 * H:], w_hh[:, 2 * H:], lin_w],
        axis=1)
    w_full_bf = w_full.astype(jnp.bfloat16)

    # Folded biases: r/z biases can be summed; b_hh of the n gate must stay separate.
    b_gates = jnp.concatenate([b_ih[:, :2 * H] + b_hh[:, :2 * H], b_ih[:, 2 * H:]], axis=1)
    b_gates2 = b_gates + lin_b @ w_ih        # extra lin_b term from the pred substitution
    b_hn = b_hh[:, 2 * H:]

    x2d = x.reshape(T_in * B, feat)          # seq-major flatten (free)
    tgt0 = tgt[0]                            # only target[0] seeds the decoder (veloc=False)

    out_shape = (
        jax.ShapeDtypeStruct((T_in * B, F), jnp.float32),     # time-major encoder output
        jax.ShapeDtypeStruct((n_dec * B, F), jnp.float32),    # time-major decoder output
    )
    vmem = pl.BlockSpec(memory_space=pltpu.MemorySpace.VMEM)
    args = (x2d, tgt0,
            params['fcin_w_t'], params['fcin_b'],
            w_ih, w_hh_bf, w_hh_pad_bf, w_full_bf,
            b_gates, b_gates2, b_hn,
            lin_w, lin_b)
    enc_l, dec_l = pl.pallas_call(
        enc_dec_kernel,
        out_shape=out_shape,
        in_specs=[vmem] * len(args),
        out_specs=(vmem, vmem),
        scratch_shapes=[pltpu.VMEM((T_in * B, H), jnp.float32)],
    )(*args)

    # Outputs are already time-major: the reshape is free, no transpose needed.
    enc = enc_l.reshape(T_in, B, F)
    dec = dec_l.reshape(n_dec, B, F)
    return enc, dec


def reference(x, tgt, p):
    """Pure-JAX (f32) mirror of the PyTorch forward (same config)."""
    def fcin(v):
        return v @ p['fcin_w_t'] + p['fcin_b']

    def cell(xt, h):
        H = HIDDEN
        gi = xt @ p['w_ih_t'] + p['b_ih']
        gh = h @ p['w_hh_t'] + p['b_hh']
        r = jax.nn.sigmoid(gi[:, :H] + gh[:, :H])
        z = jax.nn.sigmoid(gi[:, H:2 * H] + gh[:, H:2 * H])
        n = jnp.tanh(gi[:, 2 * H:] + r * gh[:, 2 * H:])
        return (1.0 - z) * n + z * h

    def out_linear(h):
        return h @ p['lin_w_t'] + p['lin_b']

    T_in, B, _ = x.shape
    h = jnp.zeros((B, HIDDEN), jnp.float32)
    enc = []
    for t in range(T_in):
        xf = fcin(x[t])
        h = cell(xf, h)
        pr = out_linear(h)
        if RESIDUAL:
            pr = pr + xf
        enc.append(pr)
    enc = jnp.stack(enc)

    dec = []
    prev = fcin(tgt[0])
    for _ in range(tgt.shape[0] - 1):
        h = cell(prev, h)
        pr = out_linear(h)
        if RESIDUAL:
            pr = pr + prev
        dec.append(pr)
        prev = pr
    dec = jnp.stack(dec)
    return enc, dec


if __name__ == "__main__":
    key = jax.random.PRNGKey(0)
    keys = jax.random.split(key, 10)

    def u(k, shape, fan_in):
        bound = 1.0 / math.sqrt(fan_in)
        return jax.random.uniform(k, shape, jnp.float32, -bound, bound)

    # Deterministic synthetic parameters (shapes per the module's __init__).
    params = {
        'fcin_w_t': u(keys[0], (INPUT_FEAT, INPUT_SIZE), INPUT_FEAT),   # Linear(72, input_size)
        'fcin_b':   u(keys[1], (1, INPUT_SIZE), INPUT_FEAT),
        'w_ih_t':   u(keys[2], (INPUT_SIZE, 3 * HIDDEN), HIDDEN),       # GRU weight_ih_l0.T
        'w_hh_t':   u(keys[3], (HIDDEN, 3 * HIDDEN), HIDDEN),           # GRU weight_hh_l0.T
        'b_ih':     u(keys[4], (1, 3 * HIDDEN), HIDDEN),
        'b_hh':     u(keys[5], (1, 3 * HIDDEN), HIDDEN),
        'lin_w_t':  u(keys[6], (HIDDEN, INPUT_SIZE), HIDDEN),           # Linear(hidden, input_size).T
        'lin_b':    u(keys[7], (1, INPUT_SIZE), HIDDEN),
    }

    T_in, T_tgt, B = 8, 6, 2
    x = jax.random.normal(keys[8], (T_in, B, INPUT_FEAT), jnp.float32)     # encoder input
    tgt = jax.random.normal(keys[9], (T_tgt, B, INPUT_FEAT), jnp.float32)  # decoder target

    enc, dec = jax.block_until_ready(encoder_decoder(x, tgt, params))

    enc_ref, dec_ref = reference(x, tgt, params)
    assert enc.shape == (T_in, B, INPUT_SIZE) and dec.shape == (T_tgt - 1, B, INPUT_SIZE)
    # Tolerance 2e-2 (was 2e-3): the serial-chain matmuls now use bf16 MXU
    # operands over the 13-step recurrence (per the performance review); all
    # accumulation and gate math remain f32.
    assert jnp.allclose(enc, enc_ref, atol=2e-2, rtol=2e-2)
    assert jnp.allclose(dec, dec_ref, atol=2e-2, rtol=2e-2)
    print("KERNEL_OK")
</pallas_src>

<mosaic_0001>
module attributes {stable_mosaic.version = 11 : i64} {
  func.func @enc_dec_kernel(%arg0: memref<16x72xf32, #tpu.memory_space<vmem>>, %arg1: memref<2x72xf32, #tpu.memory_space<vmem>>, %arg2: memref<72x16xf32, #tpu.memory_space<vmem>>, %arg3: memref<1x16xf32, #tpu.memory_space<vmem>>, %arg4: memref<16x96xf32, #tpu.memory_space<vmem>>, %arg5: memref<32x96xbf16, #tpu.memory_space<vmem>>, %arg6: memref<32x128xbf16, #tpu.memory_space<vmem>>, %arg7: memref<32x144xbf16, #tpu.memory_space<vmem>>, %arg8: memref<1x96xf32, #tpu.memory_space<vmem>>, %arg9: memref<1x96xf32, #tpu.memory_space<vmem>>, %arg10: memref<1x32xf32, #tpu.memory_space<vmem>>, %arg11: memref<32x16xf32, #tpu.memory_space<vmem>>, %arg12: memref<1x16xf32, #tpu.memory_space<vmem>>, %arg13: memref<16x16xf32, #tpu.memory_space<vmem>>, %arg14: memref<10x16xf32, #tpu.memory_space<vmem>>, %arg15: memref<16x32xf32, #tpu.memory_space<vmem>>) attributes {dimension_semantics = [], scalar_prefetch = 0 : i64, scratch_operands = 1 : i64, tpu.core_type = #tpu.core_type<tc>} {
    %c0 = arith.constant 0 : index
    %c0_0 = arith.constant 0 : index
    %0 = vector.load %arg2[%c0, %c0_0] : memref<72x16xf32, #tpu.memory_space<vmem>>, vector<72x16xf32>
    %c0_1 = arith.constant 0 : index
    %c0_2 = arith.constant 0 : index
    %1 = vector.load %arg3[%c0_1, %c0_2] : memref<1x16xf32, #tpu.memory_space<vmem>>, vector<1x16xf32>
    %c0_3 = arith.constant 0 : index
    %c0_4 = arith.constant 0 : index
    %2 = vector.load %arg4[%c0_3, %c0_4] : memref<16x96xf32, #tpu.memory_space<vmem>>, vector<16x96xf32>
    %c0_5 = arith.constant 0 : index
    %c0_6 = arith.constant 0 : index
    %3 = vector.load %arg5[%c0_5, %c0_6] : memref<32x96xbf16, #tpu.memory_space<vmem>>, vector<32x96xbf16>
    %c0_7 = arith.constant 0 : index
    %c0_8 = arith.constant 0 : index
    %4 = vector.load %arg6[%c0_7, %c0_8] : memref<32x128xbf16, #tpu.memory_space<vmem>>, vector<32x128xbf16>
    %c0_9 = arith.constant 0 : index
    %c0_10 = arith.constant 0 : index
    %5 = vector.load %arg7[%c0_9, %c0_10] : memref<32x144xbf16, #tpu.memory_space<vmem>>, vector<32x144xbf16>
    %c0_11 = arith.constant 0 : index
    %c0_12 = arith.constant 0 : index
    %6 = vector.load %arg11[%c0_11, %c0_12] : memref<32x16xf32, #tpu.memory_space<vmem>>, vector<32x16xf32>
    %c0_13 = arith.constant 0 : index
    %c0_14 = arith.constant 0 : index
    %7 = vector.load %arg8[%c0_13, %c0_14] : memref<1x96xf32, #tpu.memory_space<vmem>>, vector<1x96xf32>
    %c0_15 = arith.constant 0 : index
    %c0_16 = arith.constant 0 : index
    %8 = vector.load %arg9[%c0_15, %c0_16] : memref<1x96xf32, #tpu.memory_space<vmem>>, vector<1x96xf32>
    %c0_17 = arith.constant 0 : index
    %c0_18 = arith.constant 0 : index
    %9 = vector.load %arg10[%c0_17, %c0_18] : memref<1x32xf32, #tpu.memory_space<vmem>>, vector<1x32xf32>
    %10 = vector.shape_cast %9 : vector<1x32xf32> to vector<1x32xf32>
    %11 = vector.broadcast %10 : vector<1x32xf32> to vector<2x32xf32>
    %c0_19 = arith.constant 0 : index
    %c0_20 = arith.constant 0 : index
    %12 = vector.load %arg12[%c0_19, %c0_20] : memref<1x16xf32, #tpu.memory_space<vmem>>, vector<1x16xf32>
    %13 = vector.shape_cast %12 : vector<1x16xf32> to vector<1x16xf32>
    %14 = vector.broadcast %13 : vector<1x16xf32> to vector<2x16xf32>
    %c0_21 = arith.constant 0 : index
    %c0_22 = arith.constant 0 : index
    %15 = vector.load %arg0[%c0_21, %c0_22] : memref<16x72xf32, #tpu.memory_space<vmem>>, vector<16x72xf32>
    %cst = arith.constant dense<0.000000e+00> : vector<16x16xf32>
    %16 = tpu.matmul %15, %0, %cst {dimension_numbers = #tpu.dot_dimension_numbers<[1], [0], [0], [1], [0, 0, 1, 1], [], []>} : vector<16x72xf32>, vector<72x16xf32>, vector<16x16xf32> -> vector<16x16xf32>
    %17 = vector.broadcast %1 : vector<1x16xf32> to vector<16x16xf32>
    %18 = arith.addf %16, %17 : vector<16x16xf32>
    %cst_23 = arith.constant dense<0.000000e+00> : vector<16x96xf32>
    %19 = tpu.matmul %18, %2, %cst_23 {dimension_numbers = #tpu.dot_dimension_numbers<[1], [0], [0], [1], [0, 0, 1, 1], [], []>} : vector<16x16xf32>, vector<16x96xf32>, vector<16x96xf32> -> vector<16x96xf32>
    %20 = vector.broadcast %7 : vector<1x96xf32> to vector<16x96xf32>
    %21 = arith.addf %19, %20 : vector<16x96xf32>
    %22 = vector.extract_strided_slice %21 {offsets = [0, 0], sizes = [2, 96], strides = [1, 1]} : vector<16x96xf32> to vector<2x96xf32>
    %23 = vector.extract_strided_slice %22 {offsets = [0, 0], sizes = [2, 64], strides = [1, 1]} : vector<2x96xf32> to vector<2x64xf32>
    %24 = arith.negf %23 : vector<2x64xf32>
    %25 = math.exp %24 : vector<2x64xf32>
    %cst_24 = arith.constant 1.000000e+00 : f32
    %26 = vector.broadcast %cst_24 : f32 to vector<2x64xf32>
    %27 = arith.addf %26, %25 : vector<2x64xf32>
    %28 = arith.divf %26, %27 : vector<2x64xf32>
    %29 = vector.extract_strided_slice %28 {offsets = [0, 0], sizes = [2, 32], strides = [1, 1]} : vector<2x64xf32> to vector<2x32xf32>
    %30 = vector.extract_strided_slice %28 {offsets = [0, 32], sizes = [2, 32], strides = [1, 1]} : vector<2x64xf32> to vector<2x32xf32>
    %31 = vector.extract_strided_slice %22 {offsets = [0, 64], sizes = [2, 32], strides = [1, 1]} : vector<2x96xf32> to vector<2x32xf32>
    %32 = arith.mulf %29, %11 : vector<2x32xf32>
    %33 = arith.addf %31, %32 : vector<2x32xf32>
    %34 = math.tanh %33 : vector<2x32xf32>
    %cst_25 = arith.constant 1.000000e+00 : f32
    %35 = vector.broadcast %cst_25 : f32 to vector<2x32xf32>
    %36 = arith.subf %35, %30 : vector<2x32xf32>
    %37 = arith.mulf %36, %34 : vector<2x32xf32>
    %c0_26 = arith.constant 0 : index
    %c0_27 = arith.constant 0 : index
    %38 = vector.load %arg15[%c0_26, %c0_27] : memref<16x32xf32, #tpu.memory_space<vmem>>, vector<2x32xf32>
    tpu.vector_store %arg15[%c0_26, %c0_27], %37 {strides = array<i32>} : memref<16x32xf32, #tpu.memory_space<vmem>>, vector<2x32xf32>,
    %39 = vector.extract_strided_slice %21 {offsets = [2, 0], sizes = [2, 96], strides = [1, 1]} : vector<16x96xf32> to vector<2x96xf32>
    %40 = arith.truncf %37 : vector<2x32xf32> to vector<2x32xbf16>
    %cst_28 = arith.constant dense<0.000000e+00> : vector<2x96xf32>
    %41 = tpu.matmul %40, %3, %cst_28 {dimension_numbers = #tpu.dot_dimension_numbers<[1], [0], [0], [1], [0, 0, 1, 1], [], []>} : vector<2x32xbf16>, vector<32x96xbf16>, vector<2x96xf32> -> vector<2x96xf32>
    %42 = vector.extract_strided_slice %39 {offsets = [0, 0], sizes = [2, 64], strides = [1, 1]} : vector<2x96xf32> to vector<2x64xf32>
    %43 = vector.extract_strided_slice %41 {offsets = [0, 0], sizes = [2, 64], strides = [1, 1]} : vector<2x96xf32> to vector<2x64xf32>
    %44 = arith.addf %42, %43 : vector<2x64xf32>
    %45 = arith.negf %44 : vector<2x64xf32>
    %46 = math.exp %45 : vector<2x64xf32>
    %cst_29 = arith.constant 1.000000e+00 : f32
    %47 = vector.broadcast %cst_29 : f32 to vector<2x64xf32>
    %48 = arith.addf %47, %46 : vector<2x64xf32>
    %49 = arith.divf %47, %48 : vector<2x64xf32>
    %50 = vector.extract_strided_slice %49 {offsets = [0, 0], sizes = [2, 32], strides = [1, 1]} : vector<2x64xf32> to vector<2x32xf32>
    %51 = vector.extract_strided_slice %49 {offsets = [0, 32], sizes = [2, 32], strides = [1, 1]} : vector<2x64xf32> to vector<2x32xf32>
    %52 = vector.extract_strided_slice %39 {offsets = [0, 64], sizes = [2, 32], strides = [1, 1]} : vector<2x96xf32> to vector<2x32xf32>
    %53 = vector.extract_strided_slice %41 {offsets = [0, 64], sizes = [2, 32], strides = [1, 1]} : vector<2x96xf32> to vector<2x32xf32>
    %54 = arith.addf %53, %11 : vector<2x32xf32>
    %55 = arith.mulf %50, %54 : vector<2x32xf32>
    %56 = arith.addf %52, %55 : vector<2x32xf32>
    %57 = math.tanh %56 : vector<2x32xf32>
    %cst_30 = arith.constant 1.000000e+00 : f32
    %58 = vector.broadcast %cst_30 : f32 to vector<2x32xf32>
    %59 = arith.subf %58, %51 : vector<2x32xf32>
    %60 = arith.mulf %59, %57 : vector<2x32xf32>
    %61 = arith.mulf %51, %37 : vector<2x32xf32>
    %62 = arith.addf %60, %61 : vector<2x32xf32>
    %c2 = arith.constant 2 : index
    %c0_31 = arith.constant 0 : index
    %63 = vector.load %arg15[%c2, %c0_31] : memref<16x32xf32, #tpu.memory_space<vmem>>, vector<2x32xf32>
    tpu.vector_store %arg15[%c2, %c0_31], %62 {strides = array<i32>} : memref<16x32xf32, #tpu.memory_space<vmem>>, vector<2x32xf32>,
    %64 = vector.extract_strided_slice %21 {offsets = [4, 0], sizes = [2, 96], strides = [1, 1]} : vector<16x96xf32> to vector<2x96xf32>
    %65 = arith.truncf %62 : vector<2x32xf32> to vector<2x32xbf16>
    %cst_32 = arith.constant dense<0.000000e+00> : vector<2x96xf32>
    %66 = tpu.matmul %65, %3, %cst_32 {dimension_numbers = #tpu.dot_dimension_numbers<[1], [0], [0], [1], [0, 0, 1, 1], [], []>} : vector<2x32xbf16>, vector<32x96xbf16>, vector<2x96xf32> -> vector<2x96xf32>
    %67 = vector.extract_strided_slice %64 {offsets = [0, 0], sizes = [2, 64], strides = [1, 1]} : vector<2x96xf32> to vector<2x64xf32>
    %68 = vector.extract_strided_slice %66 {offsets = [0, 0], sizes = [2, 64], strides = [1, 1]} : vector<2x96xf32> to vector<2x64xf32>
    %69 = arith.addf %67, %68 : vector<2x64xf32>
    %70 = arith.negf %69 : vector<2x64xf32>
    %71 = math.exp %70 : vector<2x64xf32>
    %cst_33 = arith.constant 1.000000e+00 : f32
    %72 = vector.broadcast %cst_33 : f32 to vector<2x64xf32>
    %73 = arith.addf %72, %71 : vector<2x64xf32>
    %74 = arith.divf %72, %73 : vector<2x64xf32>
    %75 = vector.extract_strided_slice %74 {offsets = [0, 0], sizes = [2, 32], strides = [1, 1]} : vector<2x64xf32> to vector<2x32xf32>
    %76 = vector.extract_strided_slice %74 {offsets = [0, 32], sizes = [2, 32], strides = [1, 1]} : vector<2x64xf32> to vector<2x32xf32>
    %77 = vector.extract_strided_slice %64 {offsets = [0, 64], sizes = [2, 32], strides = [1, 1]} : vector<2x96xf32> to vector<2x32xf32>
    %78 = vector.extract_strided_slice %66 {offsets = [0, 64], sizes = [2, 32], strides = [1, 1]} : vector<2x96xf32> to vector<2x32xf32>
    %79 = arith.addf %78, %11 : vector<2x32xf32>
    %80 = arith.mulf %75, %79 : vector<2x32xf32>
    %81 = arith.addf %77, %80 : vector<2x32xf32>
    %82 = math.tanh %81 : vector<2x32xf32>
    %cst_34 = arith.constant 1.000000e+00 : f32
    %83 = vector.broadcast %cst_34 : f32 to vector<2x32xf32>
    %84 = arith.subf %83, %76 : vector<2x32xf32>
    %85 = arith.mulf %84, %82 : vector<2x32xf32>
    %86 = arith.mulf %76, %62 : vector<2x32xf32>
    %87 = arith.addf %85, %86 : vector<2x32xf32>
    %c4 = arith.constant 4 : index
    %c0_35 = arith.constant 0 : index
    %88 = vector.load %arg15[%c4, %c0_35] : memref<16x32xf32, #tpu.memory_space<vmem>>, vector<2x32xf32>
    tpu.vector_store %arg15[%c4, %c0_35], %87 {strides = array<i32>} : memref<16x32xf32, #tpu.memory_space<vmem>>, vector<2x32xf32>,
    %89 = vector.extract_strided_slice %21 {offsets = [6, 0], sizes = [2, 96], strides = [1, 1]} : vector<16x96xf32> to vector<2x96xf32>
    %90 = arith.truncf %87 : vector<2x32xf32> to vector<2x32xbf16>
    %cst_36 = arith.constant dense<0.000000e+00> : vector<2x96xf32>
    %91 = tpu.matmul %90, %3, %cst_36 {dimension_numbers = #tpu.dot_dimension_numbers<[1], [0], [0], [1], [0, 0, 1, 1], [], []>} : vector<2x32xbf16>, vector<32x96xbf16>, vector<2x96xf32> -> vector<2x96xf32>
    %92 = vector.extract_strided_slice %89 {offsets = [0, 0], sizes = [2, 64], strides = [1, 1]} : vector<2x96xf32> to vector<2x64xf32>
    %93 = vector.extract_strided_slice %91 {offsets = [0, 0], sizes = [2, 64], strides = [1, 1]} : vector<2x96xf32> to vector<2x64xf32>
    %94 = arith.addf %92, %93 : vector<2x64xf32>
    %95 = arith.negf %94 : vector<2x64xf32>
    %96 = math.exp %95 : vector<2x64xf32>
    %cst_37 = arith.constant 1.000000e+00 : f32
    %97 = vector.broadcast %cst_37 : f32 to vector<2x64xf32>
    %98 = arith.addf %97, %96 : vector<2x64xf32>
    %99 = arith.divf %97, %98 : vector<2x64xf32>
    %100 = vector.extract_strided_slice %99 {offsets = [0, 0], sizes = [2, 32], strides = [1, 1]} : vector<2x64xf32> to vector<2x32xf32>
    %101 = vector.extract_strided_slice %99 {offsets = [0, 32], sizes = [2, 32], strides = [1, 1]} : vector<2x64xf32> to vector<2x32xf32>
    %102 = vector.extract_strided_slice %89 {offsets = [0, 64], sizes = [2, 32], strides = [1, 1]} : vector<2x96xf32> to vector<2x32xf32>
    %103 = vector.extract_strided_slice %91 {offsets = [0, 64], sizes = [2, 32], strides = [1, 1]} : vector<2x96xf32> to vector<2x32xf32>
    %104 = arith.addf %103, %11 : vector<2x32xf32>
    %105 = arith.mulf %100, %104 : vector<2x32xf32>
    %106 = arith.addf %102, %105 : vector<2x32xf32>
    %107 = math.tanh %106 : vector<2x32xf32>
    %cst_38 = arith.constant 1.000000e+00 : f32
    %108 = vector.broadcast %cst_38 : f32 to vector<2x32xf32>
    %109 = arith.subf %108, %101 : vector<2x32xf32>
    %110 = arith.mulf %109, %107 : vector<2x32xf32>
    %111 = arith.mulf %101, %87 : vector<2x32xf32>
    %112 = arith.addf %110, %111 : vector<2x32xf32>
    %c6 = arith.constant 6 : index
    %c0_39 = arith.constant 0 : index
    %113 = vector.load %arg15[%c6, %c0_39] : memref<16x32xf32, #tpu.memory_space<vmem>>, vector<2x32xf32>
    tpu.vector_store %arg15[%c6, %c0_39], %112 {strides = array<i32>} : memref<16x32xf32, #tpu.memory_space<vmem>>, vector<2x32xf32>,
    %114 = vector.extract_strided_slice %21 {offsets = [8, 0], sizes = [2, 96], strides = [1, 1]} : vector<16x96xf32> to vector<2x96xf32>
    %115 = arith.truncf %112 : vector<2x32xf32> to vector<2x32xbf16>
    %cst_40 = arith.constant dense<0.000000e+00> : vector<2x96xf32>
    %116 = tpu.matmul %115, %3, %cst_40 {dimension_numbers = #tpu.dot_dimension_numbers<[1], [0], [0], [1], [0, 0, 1, 1], [], []>} : vector<2x32xbf16>, vector<32x96xbf16>, vector<2x96xf32> -> vector<2x96xf32>
    %117 = vector.extract_strided_slice %114 {offsets = [0, 0], sizes = [2, 64], strides = [1, 1]} : vector<2x96xf32> to vector<2x64xf32>
    %118 = vector.extract_strided_slice %116 {offsets = [0, 0], sizes = [2, 64], strides = [1, 1]} : vector<2x96xf32> to vector<2x64xf32>
    %119 = arith.addf %117, %118 : vector<2x64xf32>
    %120 = arith.negf %119 : vector<2x64xf32>
    %121 = math.exp %120 : vector<2x64xf32>
    %cst_41 = arith.constant 1.000000e+00 : f32
    %122 = vector.broadcast %cst_41 : f32 to vector<2x64xf32>
    %123 = arith.addf %122, %121 : vector<2x64xf32>
    %124 = arith.divf %122, %123 : vector<2x64xf32>
    %125 = vector.extract_strided_slice %124 {offsets = [0, 0], sizes = [2, 32], strides = [1, 1]} : vector<2x64xf32> to vector<2x32xf32>
    %126 = vector.extract_strided_slice %124 {offsets = [0, 32], sizes = [2, 32], strides = [1, 1]} : vector<2x64xf32> to vector<2x32xf32>
    %127 = vector.extract_strided_slice %114 {offsets = [0, 64], sizes = [2, 32], strides = [1, 1]} : vector<2x96xf32> to vector<2x32xf32>
    %128 = vector.extract_strided_slice %116 {offsets = [0, 64], sizes = [2, 32], strides = [1, 1]} : vector<2x96xf32> to vector<2x32xf32>
    %129 = arith.addf %128, %11 : vector<2x32xf32>
    %130 = arith.mulf %125, %129 : vector<2x32xf32>
    %131 = arith.addf %127, %130 : vector<2x32xf32>
    %132 = math.tanh %131 : vector<2x32xf32>
    %cst_42 = arith.constant 1.000000e+00 : f32
    %133 = vector.broadcast %cst_42 : f32 to vector<2x32xf32>
    %134 = arith.subf %133, %126 : vector<2x32xf32>
    %135 = arith.mulf %134, %132 : vector<2x32xf32>
    %136 = arith.mulf %126, %112 : vector<2x32xf32>
    %137 = arith.addf %135, %136 : vector<2x32xf32>
    %c8 = arith.constant 8 : index
    %c0_43 = arith.constant 0 : index
    %138 = vector.load %arg15[%c8, %c0_43] : memref<16x32xf32, #tpu.memory_space<vmem>>, vector<2x32xf32>
    tpu.vector_store %arg15[%c8, %c0_43], %137 {strides = array<i32>} : memref<16x32xf32, #tpu.memory_space<vmem>>, vector<2x32xf32>,
    %139 = vector.extract_strided_slice %21 {offsets = [10, 0], sizes = [2, 96], strides = [1, 1]} : vector<16x96xf32> to vector<2x96xf32>
    %140 = arith.truncf %137 : vector<2x32xf32> to vector<2x32xbf16>
    %cst_44 = arith.constant dense<0.000000e+00> : vector<2x96xf32>
    %141 = tpu.matmul %140, %3, %cst_44 {dimension_numbers = #tpu.dot_dimension_numbers<[1], [0], [0], [1], [0, 0, 1, 1], [], []>} : vector<2x32xbf16>, vector<32x96xbf16>, vector<2x96xf32> -> vector<2x96xf32>
    %142 = vector.extract_strided_slice %139 {offsets = [0, 0], sizes = [2, 64], strides = [1, 1]} : vector<2x96xf32> to vector<2x64xf32>
    %143 = vector.extract_strided_slice %141 {offsets = [0, 0], sizes = [2, 64], strides = [1, 1]} : vector<2x96xf32> to vector<2x64xf32>
    %144 = arith.addf %142, %143 : vector<2x64xf32>
    %145 = arith.negf %144 : vector<2x64xf32>
    %146 = math.exp %145 : vector<2x64xf32>
    %cst_45 = arith.constant 1.000000e+00 : f32
    %147 = vector.broadcast %cst_45 : f32 to vector<2x64xf32>
    %148 = arith.addf %147, %146 : vector<2x64xf32>
    %149 = arith.divf %147, %148 : vector<2x64xf32>
    %150 = vector.extract_strided_slice %149 {offsets = [0, 0], sizes = [2, 32], strides = [1, 1]} : vector<2x64xf32> to vector<2x32xf32>
    %151 = vector.extract_strided_slice %149 {offsets = [0, 32], sizes = [2, 32], strides = [1, 1]} : vector<2x64xf32> to vector<2x32xf32>
    %152 = vector.extract_strided_slice %139 {offsets = [0, 64], sizes = [2, 32], strides = [1, 1]} : vector<2x96xf32> to vector<2x32xf32>
    %153 = vector.extract_strided_slice %141 {offsets = [0, 64], sizes = [2, 32], strides = [1, 1]} : vector<2x96xf32> to vector<2x32xf32>
    %154 = arith.addf %153, %11 : vector<2x32xf32>
    %155 = arith.mulf %150, %154 : vector<2x32xf32>
    %156 = arith.addf %152, %155 : vector<2x32xf32>
    %157 = math.tanh %156 : vector<2x32xf32>
    %cst_46 = arith.constant 1.000000e+00 : f32
    %158 = vector.broadcast %cst_46 : f32 to vector<2x32xf32>
    %159 = arith.subf %158, %151 : vector<2x32xf32>
    %160 = arith.mulf %159, %157 : vector<2x32xf32>
    %161 = arith.mulf %151, %137 : vector<2x32xf32>
    %162 = arith.addf %160, %161 : vector<2x32xf32>
    %c10 = arith.constant 10 : index
    %c0_47 = arith.constant 0 : index
    %163 = vector.load %arg15[%c10, %c0_47] : memref<16x32xf32, #tpu.memory_space<vmem>>, vector<2x32xf32>
    tpu.vector_store %arg15[%c10, %c0_47], %162 {strides = array<i32>} : memref<16x32xf32, #tpu.memory_space<vmem>>, vector<2x32xf32>,
    %164 = vector.extract_strided_slice %21 {offsets = [12, 0], sizes = [2, 96], strides = [1, 1]} : vector<16x96xf32> to vector<2x96xf32>
    %165 = arith.truncf %162 : vector<2x32xf32> to vector<2x32xbf16>
    %cst_48 = arith.constant dense<0.000000e+00> : vector<2x96xf32>
    %166 = tpu.matmul %165, %3, %cst_48 {dimension_numbers = #tpu.dot_dimension_numbers<[1], [0], [0], [1], [0, 0, 1, 1], [], []>} : vector<2x32xbf16>, vector<32x96xbf16>, vector<2x96xf32> -> vector<2x96xf32>
    %167 = vector.extract_strided_slice %164 {offsets = [0, 0], sizes = [2, 64], strides = [1, 1]} : vector<2x96xf32> to vector<2x64xf32>
    %168 = vector.extract_strided_slice %166 {offsets = [0, 0], sizes = [2, 64], strides = [1, 1]} : vector<2x96xf32> to vector<2x64xf32>
    %169 = arith.addf %167, %168 : vector<2x64xf32>
    %170 = arith.negf %169 : vector<2x64xf32>
    %171 = math.exp %170 : vector<2x64xf32>
    %cst_49 = arith.constant 1.000000e+00 : f32
    %172 = vector.broadcast %cst_49 : f32 to vector<2x64xf32>
    %173 = arith.addf %172, %171 : vector<2x64xf32>
    %174 = arith.divf %172, %173 : vector<2x64xf32>
    %175 = vector.extract_strided_slice %174 {offsets = [0, 0], sizes = [2, 32], strides = [1, 1]} : vector<2x64xf32> to vector<2x32xf32>
    %176 = vector.extract_strided_slice %174 {offsets = [0, 32], sizes = [2, 32], strides = [1, 1]} : vector<2x64xf32> to vector<2x32xf32>
    %177 = vector.extract_strided_slice %164 {offsets = [0, 64], sizes = [2, 32], strides = [1, 1]} : vector<2x96xf32> to vector<2x32xf32>
    %178 = vector.extract_strided_slice %166 {offsets = [0, 64], sizes = [2, 32], strides = [1, 1]} : vector<2x96xf32> to vector<2x32xf32>
    %179 = arith.addf %178, %11 : vector<2x32xf32>
    %180 = arith.mulf %175, %179 : vector<2x32xf32>
    %181 = arith.addf %177, %180 : vector<2x32xf32>
    %182 = math.tanh %181 : vector<2x32xf32>
    %cst_50 = arith.constant 1.000000e+00 : f32
    %183 = vector.broadcast %cst_50 : f32 to vector<2x32xf32>
    %184 = arith.subf %183, %176 : vector<2x32xf32>
    %185 = arith.mulf %184, %182 : vector<2x32xf32>
    %186 = arith.mulf %176, %162 : vector<2x32xf32>
    %187 = arith.addf %185, %186 : vector<2x32xf32>
    %c12 = arith.constant 12 : index
    %c0_51 = arith.constant 0 : index
    %188 = vector.load %arg15[%c12, %c0_51] : memref<16x32xf32, #tpu.memory_space<vmem>>, vector<2x32xf32>
    tpu.vector_store %arg15[%c12, %c0_51], %187 {strides = array<i32>} : memref<16x32xf32, #tpu.memory_space<vmem>>, vector<2x32xf32>,
    %189 = vector.extract_strided_slice %21 {offsets = [14, 0], sizes = [2, 96], strides = [1, 1]} : vector<16x96xf32> to vector<2x96xf32>
    %190 = arith.truncf %187 : vector<2x32xf32> to vector<2x32xbf16>
    %cst_52 = arith.constant dense<0.000000e+00> : vector<2x96xf32>
    %191 = tpu.matmul %190, %3, %cst_52 {dimension_numbers = #tpu.dot_dimension_numbers<[1], [0], [0], [1], [0, 0, 1, 1], [], []>} : vector<2x32xbf16>, vector<32x96xbf16>, vector<2x96xf32> -> vector<2x96xf32>
    %192 = vector.extract_strided_slice %189 {offsets = [0, 0], sizes = [2, 64], strides = [1, 1]} : vector<2x96xf32> to vector<2x64xf32>
    %193 = vector.extract_strided_slice %191 {offsets = [0, 0], sizes = [2, 64], strides = [1, 1]} : vector<2x96xf32> to vector<2x64xf32>
    %194 = arith.addf %192, %193 : vector<2x64xf32>
    %195 = arith.negf %194 : vector<2x64xf32>
    %196 = math.exp %195 : vector<2x64xf32>
    %cst_53 = arith.constant 1.000000e+00 : f32
    %197 = vector.broadcast %cst_53 : f32 to vector<2x64xf32>
    %198 = arith.addf %197, %196 : vector<2x64xf32>
    %199 = arith.divf %197, %198 : vector<2x64xf32>
    %200 = vector.extract_strided_slice %199 {offsets = [0, 0], sizes = [2, 32], strides = [1, 1]} : vector<2x64xf32> to vector<2x32xf32>
    %201 = vector.extract_strided_slice %199 {offsets = [0, 32], sizes = [2, 32], strides = [1, 1]} : vector<2x64xf32> to vector<2x32xf32>
    %202 = vector.extract_strided_slice %189 {offsets = [0, 64], sizes = [2, 32], strides = [1, 1]} : vector<2x96xf32> to vector<2x32xf32>
    %203 = vector.extract_strided_slice %191 {offsets = [0, 64], sizes = [2, 32], strides = [1, 1]} : vector<2x96xf32> to vector<2x32xf32>
    %204 = arith.addf %203, %11 : vector<2x32xf32>
    %205 = arith.mulf %200, %204 : vector<2x32xf32>
    %206 = arith.addf %202, %205 : vector<2x32xf32>
    %207 = math.tanh %206 : vector<2x32xf32>
    %cst_54 = arith.constant 1.000000e+00 : f32
    %208 = vector.broadcast %cst_54 : f32 to vector<2x32xf32>
    %209 = arith.subf %208, %201 : vector<2x32xf32>
    %210 = arith.mulf %209, %207 : vector<2x32xf32>
    %211 = arith.mulf %201, %187 : vector<2x32xf32>
    %212 = arith.addf %210, %211 : vector<2x32xf32>
    %c14 = arith.constant 14 : index
    %c0_55 = arith.constant 0 : index
    %213 = vector.load %arg15[%c14, %c0_55] : memref<16x32xf32, #tpu.memory_space<vmem>>, vector<2x32xf32>
    tpu.vector_store %arg15[%c14, %c0_55], %212 {strides = array<i32>} : memref<16x32xf32, #tpu.memory_space<vmem>>, vector<2x32xf32>,
    %c0_56 = arith.constant 0 : index
    %c0_57 = arith.constant 0 : index
    %214 = vector.load %arg15[%c0_56, %c0_57] : memref<16x32xf32, #tpu.memory_space<vmem>>, vector<16x32xf32>
    %cst_58 = arith.constant dense<0.000000e+00> : vector<16x16xf32>
    %215 = tpu.matmul %214, %6, %cst_58 {dimension_numbers = #tpu.dot_dimension_numbers<[1], [0], [0], [1], [0, 0, 1, 1], [], []>} : vector<16x32xf32>, vector<32x16xf32>, vector<16x16xf32> -> vector<16x16xf32>
    %c0_59 = arith.constant 0 : index
    %c0_60 = arith.constant 0 : index
    %216 = vector.load %arg12[%c0_59, %c0_60] : memref<1x16xf32, #tpu.memory_space<vmem>>, vector<1x16xf32>
    %217 = vector.broadcast %216 : vector<1x16xf32> to vector<16x16xf32>
    %218 = arith.addf %215, %217 : vector<16x16xf32>
    %219 = arith.addf %218, %18 : vector<16x16xf32>
    %c0_61 = arith.constant 0 : index
    %c0_62 = arith.constant 0 : index
    %220 = vector.load %arg13[%c0_61, %c0_62] : memref<16x16xf32, #tpu.memory_space<vmem>>, vector<16x16xf32>
    tpu.vector_store %arg13[%c0_61, %c0_62], %219 {strides = array<i32>} : memref<16x16xf32, #tpu.memory_space<vmem>>, vector<16x16xf32>,
    %c0_63 = arith.constant 0 : index
    %c0_64 = arith.constant 0 : index
    %221 = vector.load %arg1[%c0_63, %c0_64] : memref<2x72xf32, #tpu.memory_space<vmem>>, vector<2x72xf32>
    %cst_65 = arith.constant dense<0.000000e+00> : vector<2x16xf32>
    %222 = tpu.matmul %221, %0, %cst_65 {dimension_numbers = #tpu.dot_dimension_numbers<[1], [0], [0], [1], [0, 0, 1, 1], [], []>} : vector<2x72xf32>, vector<72x16xf32>, vector<2x16xf32> -> vector<2x16xf32>
    %223 = vector.broadcast %1 : vector<1x16xf32> to vector<2x16xf32>
    %224 = arith.addf %222, %223 : vector<2x16xf32>
    %cst_66 = arith.constant dense<0.000000e+00> : vector<2x96xf32>
    %225 = tpu.matmul %224, %2, %cst_66 {dimension_numbers = #tpu.dot_dimension_numbers<[1], [0], [0], [1], [0, 0, 1, 1], [], []>} : vector<2x16xf32>, vector<16x96xf32>, vector<2x96xf32> -> vector<2x96xf32>
    %226 = vector.broadcast %7 : vector<1x96xf32> to vector<2x96xf32>
    %227 = arith.addf %225, %226 : vector<2x96xf32>
    %228 = arith.truncf %212 : vector<2x32xf32> to vector<2x32xbf16>
    %cst_67 = arith.constant dense<0.000000e+00> : vector<2x128xf32>
    %229 = tpu.matmul %228, %4, %cst_67 {dimension_numbers = #tpu.dot_dimension_numbers<[1], [0], [0], [1], [0, 0, 1, 1], [], []>} : vector<2x32xbf16>, vector<32x128xbf16>, vector<2x128xf32> -> vector<2x128xf32>
    %230 = vector.extract_strided_slice %227 {offsets = [0, 0], sizes = [2, 64], strides = [1, 1]} : vector<2x96xf32> to vector<2x64xf32>
    %231 = vector.extract_strided_slice %229 {offsets = [0, 0], sizes = [2, 64], strides = [1, 1]} : vector<2x128xf32> to vector<2x64xf32>
    %232 = arith.addf %230, %231 : vector<2x64xf32>
    %233 = arith.negf %232 : vector<2x64xf32>
    %234 = math.exp %233 : vector<2x64xf32>
    %cst_68 = arith.constant 1.000000e+00 : f32
    %235 = vector.broadcast %cst_68 : f32 to vector<2x64xf32>
    %236 = arith.addf %235, %234 : vector<2x64xf32>
    %237 = arith.divf %235, %236 : vector<2x64xf32>
    %238 = vector.extract_strided_slice %237 {offsets = [0, 0], sizes = [2, 32], strides = [1, 1]} : vector<2x64xf32> to vector<2x32xf32>
    %239 = vector.extract_strided_slice %237 {offsets = [0, 32], sizes = [2, 32], strides = [1, 1]} : vector<2x64xf32> to vector<2x32xf32>
    %240 = vector.extract_strided_slice %227 {offsets = [0, 64], sizes = [2, 32], strides = [1, 1]} : vector<2x96xf32> to vector<2x32xf32>
    %241 = vector.extract_strided_slice %229 {offsets = [0, 64], sizes = [2, 32], strides = [1, 1]} : vector<2x128xf32> to vector<2x32xf32>
    %242 = arith.addf %240, %241 : vector<2x32xf32>
    %243 = vector.extract_strided_slice %229 {offsets = [0, 96], sizes = [2, 32], strides = [1, 1]} : vector<2x128xf32> to vector<2x32xf32>
    %244 = arith.addf %243, %11 : vector<2x32xf32>
    %245 = arith.mulf %238, %244 : vector<2x32xf32>
    %246 = arith.addf %242, %245 : vector<2x32xf32>
    %247 = math.tanh %246 : vector<2x32xf32>
    %cst_69 = arith.constant 1.000000e+00 : f32
    %248 = vector.broadcast %cst_69 : f32 to vector<2x32xf32>
    %249 = arith.subf %248, %239 : vector<2x32xf32>
    %250 = arith.mulf %249, %247 : vector<2x32xf32>
    %251 = arith.mulf %239, %212 : vector<2x32xf32>
    %252 = arith.addf %250, %251 : vector<2x32xf32>
    %253 = arith.truncf %252 : vector<2x32xf32> to vector<2x32xbf16>
    %cst_70 = arith.constant dense<0.000000e+00> : vector<2x144xf32>
    %254 = tpu.matmul %253, %5, %cst_70 {dimension_numbers = #tpu.dot_dimension_numbers<[1], [0], [0], [1], [0, 0, 1, 1], [], []>} : vector<2x32xbf16>, vector<32x144xbf16>, vector<2x144xf32> -> vector<2x144xf32>
    %255 = vector.extract_strided_slice %254 {offsets = [0, 128], sizes = [2, 16], strides = [1, 1]} : vector<2x144xf32> to vector<2x16xf32>
    %256 = arith.addf %255, %14 : vector<2x16xf32>
    %257 = arith.addf %256, %224 : vector<2x16xf32>
    %c0_71 = arith.constant 0 : index
    %c0_72 = arith.constant 0 : index
    %258 = vector.load %arg14[%c0_71, %c0_72] : memref<10x16xf32, #tpu.memory_space<vmem>>, vector<2x16xf32>
    tpu.vector_store %arg14[%c0_71, %c0_72], %257 {strides = array<i32>} : memref<10x16xf32, #tpu.memory_space<vmem>>, vector<2x16xf32>,
    %cst_73 = arith.constant dense<0.000000e+00> : vector<2x96xf32>
    %259 = tpu.matmul %224, %2, %cst_73 {dimension_numbers = #tpu.dot_dimension_numbers<[1], [0], [0], [1], [0, 0, 1, 1], [], []>} : vector<2x16xf32>, vector<16x96xf32>, vector<2x96xf32> -> vector<2x96xf32>
    %260 = vector.broadcast %8 : vector<1x96xf32> to vector<2x96xf32>
    %261 = arith.addf %259, %260 : vector<2x96xf32>
    %262 = vector.extract_strided_slice %254 {offsets = [0, 0], sizes = [2, 128], strides = [1, 1]} : vector<2x144xf32> to vector<2x128xf32>
    %263 = vector.extract_strided_slice %261 {offsets = [0, 0], sizes = [2, 64], strides = [1, 1]} : vector<2x96xf32> to vector<2x64xf32>
    %264 = vector.extract_strided_slice %262 {offsets = [0, 0], sizes = [2, 64], strides = [1, 1]} : vector<2x128xf32> to vector<2x64xf32>
    %265 = arith.addf %263, %264 : vector<2x64xf32>
    %266 = arith.negf %265 : vector<2x64xf32>
    %267 = math.exp %266 : vector<2x64xf32>
    %cst_74 = arith.constant 1.000000e+00 : f32
    %268 = vector.broadcast %cst_74 : f32 to vector<2x64xf32>
    %269 = arith.addf %268, %267 : vector<2x64xf32>
    %270 = arith.divf %268, %269 : vector<2x64xf32>
    %271 = vector.extract_strided_slice %270 {offsets = [0, 0], sizes = [2, 32], strides = [1, 1]} : vector<2x64xf32> to vector<2x32xf32>
    %272 = vector.extract_strided_slice %270 {offsets = [0, 32], sizes = [2, 32], strides = [1, 1]} : vector<2x64xf32> to vector<2x32xf32>
    %273 = vector.extract_strided_slice %261 {offsets = [0, 64], sizes = [2, 32], strides = [1, 1]} : vector<2x96xf32> to vector<2x32xf32>
    %274 = vector.extract_strided_slice %262 {offsets = [0, 64], sizes = [2, 32], strides = [1, 1]} : vector<2x128xf32> to vector<2x32xf32>
    %275 = arith.addf %273, %274 : vector<2x32xf32>
    %276 = vector.extract_strided_slice %262 {offsets = [0, 96], sizes = [2, 32], strides = [1, 1]} : vector<2x128xf32> to vector<2x32xf32>
    %277 = arith.addf %276, %11 : vector<2x32xf32>
    %278 = arith.mulf %271, %277 : vector<2x32xf32>
    %279 = arith.addf %275, %278 : vector<2x32xf32>
    %280 = math.tanh %279 : vector<2x32xf32>
    %cst_75 = arith.constant 1.000000e+00 : f32
    %281 = vector.broadcast %cst_75 : f32 to vector<2x32xf32>
    %282 = arith.subf %281, %272 : vector<2x32xf32>
    %283 = arith.mulf %282, %280 : vector<2x32xf32>
    %284 = arith.mulf %272, %252 : vector<2x32xf32>
    %285 = arith.addf %283, %284 : vector<2x32xf32>
    %286 = arith.truncf %285 : vector<2x32xf32> to vector<2x32xbf16>
    %cst_76 = arith.constant dense<0.000000e+00> : vector<2x144xf32>
    %287 = tpu.matmul %286, %5, %cst_76 {dimension_numbers = #tpu.dot_dimension_numbers<[1], [0], [0], [1], [0, 0, 1, 1], [], []>} : vector<2x32xbf16>, vector<32x144xbf16>, vector<2x144xf32> -> vector<2x144xf32>
    %288 = vector.extract_strided_slice %287 {offsets = [0, 128], sizes = [2, 16], strides = [1, 1]} : vector<2x144xf32> to vector<2x16xf32>
    %289 = arith.addf %288, %14 : vector<2x16xf32>
    %290 = arith.addf %289, %257 : vector<2x16xf32>
    %c2_77 = arith.constant 2 : index
    %c0_78 = arith.constant 0 : index
    %291 = vector.load %arg14[%c2_77, %c0_78] : memref<10x16xf32, #tpu.memory_space<vmem>>, vector<2x16xf32>
    tpu.vector_store %arg14[%c2_77, %c0_78], %290 {strides = array<i32>} : memref<10x16xf32, #tpu.memory_space<vmem>>, vector<2x16xf32>,
    %cst_79 = arith.constant dense<0.000000e+00> : vector<2x96xf32>
    %292 = tpu.matmul %257, %2, %cst_79 {dimension_numbers = #tpu.dot_dimension_numbers<[1], [0], [0], [1], [0, 0, 1, 1], [], []>} : vector<2x16xf32>, vector<16x96xf32>, vector<2x96xf32> -> vector<2x96xf32>
    %293 = vector.broadcast %8 : vector<1x96xf32> to vector<2x96xf32>
    %294 = arith.addf %292, %293 : vector<2x96xf32>
    %295 = vector.extract_strided_slice %287 {offsets = [0, 0], sizes = [2, 128], strides = [1, 1]} : vector<2x144xf32> to vector<2x128xf32>
    %296 = vector.extract_strided_slice %294 {offsets = [0, 0], sizes = [2, 64], strides = [1, 1]} : vector<2x96xf32> to vector<2x64xf32>
    %297 = vector.extract_strided_slice %295 {offsets = [0, 0], sizes = [2, 64], strides = [1, 1]} : vector<2x128xf32> to vector<2x64xf32>
    %298 = arith.addf %296, %297 : vector<2x64xf32>
    %299 = arith.negf %298 : vector<2x64xf32>
    %300 = math.exp %299 : vector<2x64xf32>
    %cst_80 = arith.constant 1.000000e+00 : f32
    %301 = vector.broadcast %cst_80 : f32 to vector<2x64xf32>
    %302 = arith.addf %301, %300 : vector<2x64xf32>
    %303 = arith.divf %301, %302 : vector<2x64xf32>
    %304 = vector.extract_strided_slice %303 {offsets = [0, 0], sizes = [2, 32], strides = [1, 1]} : vector<2x64xf32> to vector<2x32xf32>
    %305 = vector.extract_strided_slice %303 {offsets = [0, 32], sizes = [2, 32], strides = [1, 1]} : vector<2x64xf32> to vector<2x32xf32>
    %306 = vector.extract_strided_slice %294 {offsets = [0, 64], sizes = [2, 32], strides = [1, 1]} : vector<2x96xf32> to vector<2x32xf32>
    %307 = vector.extract_strided_slice %295 {offsets = [0, 64], sizes = [2, 32], strides = [1, 1]} : vector<2x128xf32> to vector<2x32xf32>
    %308 = arith.addf %306, %307 : vector<2x32xf32>
    %309 = vector.extract_strided_slice %295 {offsets = [0, 96], sizes = [2, 32], strides = [1, 1]} : vector<2x128xf32> to vector<2x32xf32>
    %310 = arith.addf %309, %11 : vector<2x32xf32>
    %311 = arith.mulf %304, %310 : vector<2x32xf32>
    %312 = arith.addf %308, %311 : vector<2x32xf32>
    %313 = math.tanh %312 : vector<2x32xf32>
    %cst_81 = arith.constant 1.000000e+00 : f32
    %314 = vector.broadcast %cst_81 : f32 to vector<2x32xf32>
    %315 = arith.subf %314, %305 : vector<2x32xf32>
    %316 = arith.mulf %315, %313 : vector<2x32xf32>
    %317 = arith.mulf %305, %285 : vector<2x32xf32>
    %318 = arith.addf %316, %317 : vector<2x32xf32>
    %319 = arith.truncf %318 : vector<2x32xf32> to vector<2x32xbf16>
    %cst_82 = arith.constant dense<0.000000e+00> : vector<2x144xf32>
    %320 = tpu.matmul %319, %5, %cst_82 {dimension_numbers = #tpu.dot_dimension_numbers<[1], [0], [0], [1], [0, 0, 1, 1], [], []>} : vector<2x32xbf16>, vector<32x144xbf16>, vector<2x144xf32> -> vector<2x144xf32>
    %321 = vector.extract_strided_slice %320 {offsets = [0, 128], sizes = [2, 16], strides = [1, 1]} : vector<2x144xf32> to vector<2x16xf32>
    %322 = arith.addf %321, %14 : vector<2x16xf32>
    %323 = arith.addf %322, %290 : vector<2x16xf32>
    %c4_83 = arith.constant 4 : index
    %c0_84 = arith.constant 0 : index
    %324 = vector.load %arg14[%c4_83, %c0_84] : memref<10x16xf32, #tpu.memory_space<vmem>>, vector<2x16xf32>
    tpu.vector_store %arg14[%c4_83, %c0_84], %323 {strides = array<i32>} : memref<10x16xf32, #tpu.memory_space<vmem>>, vector<2x16xf32>,
    %cst_85 = arith.constant dense<0.000000e+00> : vector<2x96xf32>
    %325 = tpu.matmul %290, %2, %cst_85 {dimension_numbers = #tpu.dot_dimension_numbers<[1], [0], [0], [1], [0, 0, 1, 1], [], []>} : vector<2x16xf32>, vector<16x96xf32>, vector<2x96xf32> -> vector<2x96xf32>
    %326 = vector.broadcast %8 : vector<1x96xf32> to vector<2x96xf32>
    %327 = arith.addf %325, %326 : vector<2x96xf32>
    %328 = vector.extract_strided_slice %320 {offsets = [0, 0], sizes = [2, 128], strides = [1, 1]} : vector<2x144xf32> to vector<2x128xf32>
    %329 = vector.extract_strided_slice %327 {offsets = [0, 0], sizes = [2, 64], strides = [1, 1]} : vector<2x96xf32> to vector<2x64xf32>
    %330 = vector.extract_strided_slice %328 {offsets = [0, 0], sizes = [2, 64], strides = [1, 1]} : vector<2x128xf32> to vector<2x64xf32>
    %331 = arith.addf %329, %330 : vector<2x64xf32>
    %332 = arith.negf %331 : vector<2x64xf32>
    %333 = math.exp %332 : vector<2x64xf32>
    %cst_86 = arith.constant 1.000000e+00 : f32
    %334 = vector.broadcast %cst_86 : f32 to vector<2x64xf32>
    %335 = arith.addf %334, %333 : vector<2x64xf32>
    %336 = arith.divf %334, %335 : vector<2x64xf32>
    %337 = vector.extract_strided_slice %336 {offsets = [0, 0], sizes = [2, 32], strides = [1, 1]} : vector<2x64xf32> to vector<2x32xf32>
    %338 = vector.extract_strided_slice %336 {offsets = [0, 32], sizes = [2, 32], strides = [1, 1]} : vector<2x64xf32> to vector<2x32xf32>
    %339 = vector.extract_strided_slice %327 {offsets = [0, 64], sizes = [2, 32], strides = [1, 1]} : vector<2x96xf32> to vector<2x32xf32>
    %340 = vector.extract_strided_slice %328 {offsets = [0, 64], sizes = [2, 32], strides = [1, 1]} : vector<2x128xf32> to vector<2x32xf32>
    %341 = arith.addf %339, %340 : vector<2x32xf32>
    %342 = vector.extract_strided_slice %328 {offsets = [0, 96], sizes = [2, 32], strides = [1, 1]} : vector<2x128xf32> to vector<2x32xf32>
    %343 = arith.addf %342, %11 : vector<2x32xf32>
    %344 = arith.mulf %337, %343 : vector<2x32xf32>
    %345 = arith.addf %341, %344 : vector<2x32xf32>
    %346 = math.tanh %345 : vector<2x32xf32>
    %cst_87 = arith.constant 1.000000e+00 : f32
    %347 = vector.broadcast %cst_87 : f32 to vector<2x32xf32>
    %348 = arith.subf %347, %338 : vector<2x32xf32>
    %349 = arith.mulf %348, %346 : vector<2x32xf32>
    %350 = arith.mulf %338, %318 : vector<2x32xf32>
    %351 = arith.addf %349, %350 : vector<2x32xf32>
    %352 = arith.truncf %351 : vector<2x32xf32> to vector<2x32xbf16>
    %cst_88 = arith.constant dense<0.000000e+00> : vector<2x144xf32>
    %353 = tpu.matmul %352, %5, %cst_88 {dimension_numbers = #tpu.dot_dimension_numbers<[1], [0], [0], [1], [0, 0, 1, 1], [], []>} : vector<2x32xbf16>, vector<32x144xbf16>, vector<2x144xf32> -> vector<2x144xf32>
    %354 = vector.extract_strided_slice %353 {offsets = [0, 128], sizes = [2, 16], strides = [1, 1]} : vector<2x144xf32> to vector<2x16xf32>
    %355 = arith.addf %354, %14 : vector<2x16xf32>
    %356 = arith.addf %355, %323 : vector<2x16xf32>
    %c6_89 = arith.constant 6 : index
    %c0_90 = arith.constant 0 : index
    %357 = vector.load %arg14[%c6_89, %c0_90] : memref<10x16xf32, #tpu.memory_space<vmem>>, vector<2x16xf32>
    tpu.vector_store %arg14[%c6_89, %c0_90], %356 {strides = array<i32>} : memref<10x16xf32, #tpu.memory_space<vmem>>, vector<2x16xf32>,
    %cst_91 = arith.constant dense<0.000000e+00> : vector<2x96xf32>
    %358 = tpu.matmul %323, %2, %cst_91 {dimension_numbers = #tpu.dot_dimension_numbers<[1], [0], [0], [1], [0, 0, 1, 1], [], []>} : vector<2x16xf32>, vector<16x96xf32>, vector<2x96xf32> -> vector<2x96xf32>
    %359 = vector.broadcast %8 : vector<1x96xf32> to vector<2x96xf32>
    %360 = arith.addf %358, %359 : vector<2x96xf32>
    %361 = vector.extract_strided_slice %353 {offsets = [0, 0], sizes = [2, 128], strides = [1, 1]} : vector<2x144xf32> to vector<2x128xf32>
    %362 = vector.extract_strided_slice %360 {offsets = [0, 0], sizes = [2, 64], strides = [1, 1]} : vector<2x96xf32> to vector<2x64xf32>
    %363 = vector.extract_strided_slice %361 {offsets = [0, 0], sizes = [2, 64], strides = [1, 1]} : vector<2x128xf32> to vector<2x64xf32>
    %364 = arith.addf %362, %363 : vector<2x64xf32>
    %365 = arith.negf %364 : vector<2x64xf32>
    %366 = math.exp %365 : vector<2x64xf32>
    %cst_92 = arith.constant 1.000000e+00 : f32
    %367 = vector.broadcast %cst_92 : f32 to vector<2x64xf32>
    %368 = arith.addf %367, %366 : vector<2x64xf32>
    %369 = arith.divf %367, %368 : vector<2x64xf32>
    %370 = vector.extract_strided_slice %369 {offsets = [0, 0], sizes = [2, 32], strides = [1, 1]} : vector<2x64xf32> to vector<2x32xf32>
    %371 = vector.extract_strided_slice %369 {offsets = [0, 32], sizes = [2, 32], strides = [1, 1]} : vector<2x64xf32> to vector<2x32xf32>
    %372 = vector.extract_strided_slice %360 {offsets = [0, 64], sizes = [2, 32], strides = [1, 1]} : vector<2x96xf32> to vector<2x32xf32>
    %373 = vector.extract_strided_slice %361 {offsets = [0, 64], sizes = [2, 32], strides = [1, 1]} : vector<2x128xf32> to vector<2x32xf32>
    %374 = arith.addf %372, %373 : vector<2x32xf32>
    %375 = vector.extract_strided_slice %361 {offsets = [0, 96], sizes = [2, 32], strides = [1, 1]} : vector<2x128xf32> to vector<2x32xf32>
    %376 = arith.addf %375, %11 : vector<2x32xf32>
    %377 = arith.mulf %370, %376 : vector<2x32xf32>
    %378 = arith.addf %374, %377 : vector<2x32xf32>
    %379 = math.tanh %378 : vector<2x32xf32>
    %cst_93 = arith.constant 1.000000e+00 : f32
    %380 = vector.broadcast %cst_93 : f32 to vector<2x32xf32>
    %381 = arith.subf %380, %371 : vector<2x32xf32>
    %382 = arith.mulf %381, %379 : vector<2x32xf32>
    %383 = arith.mulf %371, %351 : vector<2x32xf32>
    %384 = arith.addf %382, %383 : vector<2x32xf32>
    %385 = arith.truncf %384 : vector<2x32xf32> to vector<2x32xbf16>
    %cst_94 = arith.constant dense<0.000000e+00> : vector<2x144xf32>
    %386 = tpu.matmul %385, %5, %cst_94 {dimension_numbers = #tpu.dot_dimension_numbers<[1], [0], [0], [1], [0, 0, 1, 1], [], []>} : vector<2x32xbf16>, vector<32x144xbf16>, vector<2x144xf32> -> vector<2x144xf32>
    %387 = vector.extract_strided_slice %386 {offsets = [0, 128], sizes = [2, 16], strides = [1, 1]} : vector<2x144xf32> to vector<2x16xf32>
    %388 = arith.addf %387, %14 : vector<2x16xf32>
    %389 = arith.addf %388, %356 : vector<2x16xf32>
    %c8_95 = arith.constant 8 : index
    %c0_96 = arith.constant 0 : index
    %390 = vector.load %arg14[%c8_95, %c0_96] : memref<10x16xf32, #tpu.memory_space<vmem>>, vector<2x16xf32>
    tpu.vector_store %arg14[%c8_95, %c0_96], %389 {strides = array<i32>} : memref<10x16xf32, #tpu.memory_space<vmem>>, vector<2x16xf32>,
    return
  }
}

</mosaic_0001>

<llo_original>
// kernel: encoder_decoder.1
$region0: #{encoder_decoder.1}
  #allocation0 [shape = 'u32[]', space=smem, size = 0x4, offset = 0x4, fixed_abs, tag = 'smem constant byte address 0x4 - core index']
  #allocation1 [shape = 'u32[144,128]{1,0:T(1,128)}', space=vmem, size = 0x12000, scoped, tag = 'internal scratch']
  #allocation2 [shape = 'f32[16,32]{1,0:T(8,128)}', space=vmem, size = 0x2000, scoped, tag = 'scratch operand']
  %s0 = inlined_call_operand.vmem [shape: f32[16,72], index: 0, kind: input, shape index: {}]
  %s1 = inlined_call_operand.vmem [shape: f32[2,72], index: 1, kind: input, shape index: {}]
  %s2 = inlined_call_operand.vmem [shape: f32[72,16], index: 2, kind: input, shape index: {}]
  %s3 = inlined_call_operand.vmem [shape: f32[1,16], index: 3, kind: input, shape index: {}]
  %s4 = inlined_call_operand.vmem [shape: f32[16,96], index: 4, kind: input, shape index: {}]
  %s5 = inlined_call_operand.vmem [shape: bf16[32,96], index: 5, kind: input, shape index: {}]
  %s6 = inlined_call_operand.vmem [shape: bf16[32,128], index: 6, kind: input, shape index: {}]
  %s7 = inlined_call_operand.vmem [shape: bf16[32,144], index: 7, kind: input, shape index: {}]
  %s8 = inlined_call_operand.vmem [shape: f32[1,96], index: 8, kind: input, shape index: {}]
  %s9 = inlined_call_operand.vmem [shape: f32[1,96], index: 9, kind: input, shape index: {}]
  %s10 = inlined_call_operand.vmem [shape: f32[1,32], index: 10, kind: input, shape index: {}]
  %s11 = inlined_call_operand.vmem [shape: f32[32,16], index: 11, kind: input, shape index: {}]
  %s12 = inlined_call_operand.vmem [shape: f32[1,16], index: 12, kind: input, shape index: {}]
  %s13 = inlined_call_operand.hbm [shape: f32[16,16], index: 13, kind: output, shape index: {0}]
  %s14 = inlined_call_operand.vmem [shape: f32[10,16], index: 14, kind: output, shape index: {1}]
  %15 = xla_tuple %s13, %s14
  %s16 = sld [smem:[#allocation0]]
  $region70: #{encoder_decoder.1} parent=0
    _
  %s18 = ssub.s32 1, %s16
  %s19 = scalar_select 0, %s18, %s16
  $region1: #{encoder_decoder.1} parent=0
    #allocation3 [shape = 'u8[8192]{0}', space=vmem, size = 0x2000, scoped, tag = 'output window, operand 0, single buffered']
    #allocation4 [shape = 's32[1]{0}', space=sflag, size = 0x4, scoped, tag = 'scoped memory for encoder_decoder.1']
    %20 = vsyncpa [#allocation4], 0
    // Predicated region
    $region2: #{encoder_decoder.1} parent=1 // pred_check
      _
    $region3: #{encoder_decoder.1} parent=1 // pred_check_branch
      %22 = sbr.rel (0) target = $region5
    $region4: #{encoder_decoder.1} parent=1 // pred_region
      _
    $region5: #{encoder_decoder.1} parent=1 // pred_fallthru
      _
    // Predicated region
    $region6: #{encoder_decoder.1} parent=1 // pred_check
      _
    $region7: #{encoder_decoder.1} parent=1 // pred_check_branch
      %24 = sbr.rel (0) target = $region9
    $region8: #{encoder_decoder.1} parent=1 // pred_region
      _
    $region9: #{encoder_decoder.1} parent=1 // pred_fallthru
      _
    // Predicated region
    $region10: #{encoder_decoder.1} parent=1 // pred_check
      _
    $region11: #{encoder_decoder.1} parent=1 // pred_check_branch
      %26 = sbr.rel (0) target = $region13
    $region12: #{encoder_decoder.1} parent=1 // pred_region
      _
    $region13: #{encoder_decoder.1} parent=1 // pred_fallthru
      _
    // Predicated region
    $region14: #{encoder_decoder.1} parent=1 // pred_check
      _
    $region15: #{encoder_decoder.1} parent=1 // pred_check_branch
      %28 = sbr.rel (0) target = $region17
    $region16: #{encoder_decoder.1} parent=1 // pred_region
      _
    $region17: #{encoder_decoder.1} parent=1 // pred_fallthru
      _
    // Predicated region
    $region18: #{encoder_decoder.1} parent=1 // pred_check
      _
    $region19: #{encoder_decoder.1} parent=1 // pred_check_branch
      %30 = sbr.rel (0) target = $region21
    $region20: #{encoder_decoder.1} parent=1 // pred_region
      _
    $region21: #{encoder_decoder.1} parent=1 // pred_fallthru
      _
    // Predicated region
    $region22: #{encoder_decoder.1} parent=1 // pred_check
      _
    $region23: #{encoder_decoder.1} parent=1 // pred_check_branch
      %32 = sbr.rel (0) target = $region25
    $region24: #{encoder_decoder.1} parent=1 // pred_region
      _
    $region25: #{encoder_decoder.1} parent=1 // pred_fallthru
      _
    // Predicated region
    $region26: #{encoder_decoder.1} parent=1 // pred_check
      _
    $region27: #{encoder_decoder.1} parent=1 // pred_check_branch
      %34 = sbr.rel (0) target = $region29
    $region28: #{encoder_decoder.1} parent=1 // pred_region
      _
    $region29: #{encoder_decoder.1} parent=1 // pred_fallthru
      _
    // Predicated region
    $region30: #{encoder_decoder.1} parent=1 // pred_check
      _
    $region31: #{encoder_decoder.1} parent=1 // pred_check_branch
      %36 = sbr.rel (0) target = $region33
    $region32: #{encoder_decoder.1} parent=1 // pred_region
      _
    $region33: #{encoder_decoder.1} parent=1 // pred_fallthru
      _
    // Predicated region
    $region34: #{encoder_decoder.1} parent=1 // pred_check
      _
    $region35: #{encoder_decoder.1} parent=1 // pred_check_branch
      %38 = sbr.rel (0) target = $region37
    $region36: #{encoder_decoder.1} parent=1 // pred_region
      _
    $region37: #{encoder_decoder.1} parent=1 // pred_fallthru
      _
    // Predicated region
    $region38: #{encoder_decoder.1} parent=1 // pred_check
      _
    $region39: #{encoder_decoder.1} parent=1 // pred_check_branch
      %40 = sbr.rel (0) target = $region41
    $region40: #{encoder_decoder.1} parent=1 // pred_region
      _
    $region41: #{encoder_decoder.1} parent=1 // pred_fallthru
      _
    // Predicated region
    $region42: #{encoder_decoder.1} parent=1 // pred_check
      _
    $region43: #{encoder_decoder.1} parent=1 // pred_check_branch
      %42 = sbr.rel (0) target = $region45
    $region44: #{encoder_decoder.1} parent=1 // pred_region
      _
    $region45: #{encoder_decoder.1} parent=1 // pred_fallthru
      _
    // Predicated region
    $region46: #{encoder_decoder.1} parent=1 // pred_check
      _
    $region47: #{encoder_decoder.1} parent=1 // pred_check_branch
      %44 = sbr.rel (0) target = $region49
    $region48: #{encoder_decoder.1} parent=1 // pred_region
      _
    $region49: #{encoder_decoder.1} parent=1 // pred_fallthru
      _
    // Predicated region
    $region50: #{encoder_decoder.1} parent=1 // pred_check
      _
    $region51: #{encoder_decoder.1} parent=1 // pred_check_branch
      %46 = sbr.rel (0) target = $region53
    $region52: #{encoder_decoder.1} parent=1 // pred_region
      _
    $region53: #{encoder_decoder.1} parent=1 // pred_fallthru
      _
    %v48 = vld [vmem:[%s2] sm:$0xff]
    %v49 = vld [vmem:[%s2 + $0x8] sm:$0xff]
    %v50 = vld [vmem:[%s2 + $0x10] sm:$0xff]
    %v51 = vld [vmem:[%s2 + $0x18] sm:$0xff]
    %v52 = vld [vmem:[%s2 + $0x20] sm:$0xff]
    %v53 = vld [vmem:[%s2 + $0x28] sm:$0xff]
    %v54 = vld [vmem:[%s2 + $0x30] sm:$0xff]
    %v55 = vld [vmem:[%s2 + $0x38] sm:$0xff]
    %v56 = vld [vmem:[%s2 + $0x40] sm:$0xff]
    %v57 = vld [vmem:[%s3] sm:$0x1]
    %v58 = vld [vmem:[%s4] sm:$0xff]
    %v59 = vld [vmem:[%s4 + $0x8] sm:$0xff]
    %v60 = vld [vmem:[%s5] sm:$0xf]
    %v61 = vld [vmem:[%s5 + $0x4] sm:$0xf]
    %v62 = vld [vmem:[%s5 + $0x8] sm:$0xf]
    %v63 = vld [vmem:[%s5 + $0xc] sm:$0xf]
    %v64 = vld [vmem:[%s6] sm:$0xf]
    %v65 = vld [vmem:[%s6 + $0x4] sm:$0xf]
    %v66 = vld [vmem:[%s6 + $0x8] sm:$0xf]
    %v67 = vld [vmem:[%s6 + $0xc] sm:$0xf]
    %v68 = vld [vmem:[%s7] sm:$0xff]
    %v69 = vld [vmem:[%s7 + $0x8] sm:$0xff]
    %v70 = vld [vmem:[%s7 + $0x10] sm:$0xff]
    %v71 = vld [vmem:[%s7 + $0x18] sm:$0xff]
    %v72 = vld [vmem:[%s11] sm:$0xff]
    %v73 = vld [vmem:[%s11 + $0x8] sm:$0xff]
    %v74 = vld [vmem:[%s11 + $0x10] sm:$0xff]
    %v75 = vld [vmem:[%s11 + $0x18] sm:$0xff]
    %v76 = vld [vmem:[%s8] sm:$0x1]
    %v77 = vld [vmem:[%s9] sm:$0x1]
    %v78 = vld [vmem:[%s10] sm:$0x1]
    %v80 = vlaneseq
    %v81 = vshrl.u32 %v80, 7
    %v82 = vsub.s32 0, %v81
    %v83 = vrot.slane %v78, %v82
    %v85 = vld [vmem:[%s12] sm:$0x1]
    %v87 = vlaneseq
    %v88 = vshrl.u32 %v87, 7
    %v89 = vsub.s32 0, %v88
    %v90 = vrot.slane %v85, %v89
    %v92 = vld [vmem:[%s0] sm:$0xff]
    %v93 = vld [vmem:[%s0 + $0x8] sm:$0xff]
    %v95 = vlaneseq
    %v96 = vshrl.u32 %v95, 7
    %v97 = vsub.s32 0, %v96
    %v98 = vrot.slane %v57, %v97
    %vm100 = vcmask 588800
    %v102 = vsel %vm100, %v92, 0
    %v105 = vsel %vm100, %v93, 0
    %107 = vmatprep.subr.mxu0 0.0
    %108 = vmatpush1.msra.mxu0 %v48
    %109 = vmatprep.subr.mxu0 0.0
    %110 = vmatpush1.msra.mxu0 %v49
    %111 = vmatprep.subr.mxu0 0.0
    %112 = vmatpush1.msra.mxu0 %v50
    %113 = vmatprep.subr.mxu0 0.0
    %114 = vmatpush1.msra.mxu0 %v51
    %115 = vmatprep.subr.mxu0 0.0
    %116 = vmatpush1.msra.mxu0 %v52
    %117 = vmatprep.subr.mxu0 0.0
    %118 = vmatpush1.msra.mxu0 %v53
    %119 = vmatprep.subr.mxu0 0.0
    %120 = vmatpush1.msra.mxu0 %v54
    %121 = vmatprep.subr.mxu0 0.0
    %122 = vmatpush1.msra.mxu0 %v55
    %123 = vmatprep.subr.mxu0 0.0
    %124 = vmatpush1.msra.mxu0 %v56
    %125 = vmatprep.subr.mxu0 0.0
    %126 = vmatpush1.msra.mxu0 0.0
    %127 = vmatprep.subr.mxu0 0.0
    %128 = vmatpush1.msra.mxu0 0.0
    %129 = vmatprep.subr.mxu0 0.0
    %130 = vmatpush1.msra.mxu0 0.0
    %131 = vmatprep.subr.mxu0 0.0
    %132 = vmatpush1.msra.mxu0 0.0
    %133 = vmatprep.subr.mxu0 0.0
    %134 = vmatpush1.msra.mxu0 0.0
    %135 = vmatprep.subr.mxu0 0.0
    %136 = vmatpush1.msra.mxu0 0.0
    %137 = vmatprep.subr.mxu0 0.0
    %138 = vmatpush1.msra.mxu0 0.0
    %139 = vmatprep.subr.mxu0 0.0
    %140 = vmatpush1.msra.mxu0 0.0
    %141 = vmatprep.subr.mxu0 0.0
    %142 = vmatpush1.msra.mxu0 0.0
    %143 = vmatprep.subr.mxu0 0.0
    %144 = vmatpush1.msra.mxu0 0.0
    %145 = vmatprep.subr.mxu0 0.0
    %146 = vmatpush1.msra.mxu0 0.0
    %147 = vmatprep.subr.mxu0 0.0
    %148 = vmatpush1.msra.mxu0 0.0
    %149 = vmatprep.subr.mxu0 0.0
    %150 = vmatpush1.msra.mxu0 0.0
    %151 = vmatprep.subr.mxu0 0.0
    %152 = vmatpush1.msra.mxu0 0.0
    %153 = vmatprep.subr.mxu0 0.0
    %154 = vmatpush1.msra.mxu0 0.0
    %155 = vmatprep.subr.mxu0 0.0
    %156 = vmatpush1.msra.mxu0 0.0
    %157 = vmatprep.subr.mxu0 0.0
    %158 = vmatpush1.msra.mxu0 0.0
    %159 = vmatprep.subr.mxu0 0.0
    %160 = vmatpush1.msra.mxu0 0.0
    %161 = vmatprep.subr.mxu0 0.0
    %162 = vmatpush1.msra.mxu0 0.0
    %163 = vmatprep.subr.mxu0 0.0
    %164 = vmatpush1.msra.mxu0 0.0
    %165 = vmatprep.subr.mxu0 0.0
    %166 = vmatpush1.msra.mxu0 0.0
    %167 = vmatprep.subr.mxu0 0.0
    %168 = vmatpush1.msra.mxu0 0.0
    %169 = vmatprep.subr.mxu0 0.0
    %170 = vmatpush1.msra.mxu0 0.0
    %171 = vmatprep.mubr.f32.mxu0 0.0
    %172 = vmatmul.mubr.f32.gmra.mrb[0].mxu0 %v102
    %v173 = vpop.f32.mrb[0].mxu0
    %v174 = vadd.f32 %v98, %v173
    %v175 = vpop.f32.mrb[0].mxu0
    %176 = vmatprep.mubr.f32.mxu0 0.0
    %177 = vmatmul.mubr.f32.gmra.mrb[0].mxu0 %v105
    %v178 = vpop.f32.mrb[0].mxu0
    %v179 = vadd.f32 %v98, %v178
    %v180 = vpop.f32.mrb[0].mxu0
    %181 = vdwg.mxu0
    %v183 = vlaneseq
    %v184 = vshrl.u32 %v183, 7
    %v185 = vsub.s32 0, %v184
    %v186 = vrot.slane %v76, %v185
    %vm188 = vcmask 130048
    %v190 = vsel %vm188, %v174, 0
    %v193 = vsel %vm188, %v179, 0
    %195 = vmatprep.subr.mxu0 0.0
    %196 = vmatpush1.msra.mxu0 %v58
    %197 = vmatprep.subr.mxu0 0.0
    %198 = vmatpush1.msra.mxu0 %v59
    %199 = vmatprep.subr.mxu0 0.0
    %200 = vmatpush1.msra.mxu0 0.0
    %201 = vmatprep.subr.mxu0 0.0
    %202 = vmatpush1.msra.mxu0 0.0
    %203 = vmatprep.subr.mxu0 0.0
    %204 = vmatpush1.msra.mxu0 0.0
    %205 = vmatprep.subr.mxu0 0.0
    %206 = vmatpush1.msra.mxu0 0.0
    %207 = vmatprep.subr.mxu0 0.0
    %208 = vmatpush1.msra.mxu0 0.0
    %209 = vmatprep.subr.mxu0 0.0
    %210 = vmatpush1.msra.mxu0 0.0
    %211 = vmatprep.subr.mxu0 0.0
    %212 = vmatpush1.msra.mxu0 0.0
    %213 = vmatprep.subr.mxu0 0.0
    %214 = vmatpush1.msra.mxu0 0.0
    %215 = vmatprep.subr.mxu0 0.0
    %216 = vmatpush1.msra.mxu0 0.0
    %217 = vmatprep.subr.mxu0 0.0
    %218 = vmatpush1.msra.mxu0 0.0
    %219 = vmatprep.subr.mxu0 0.0
    %220 = vmatpush1.msra.mxu0 0.0
    %221 = vmatprep.subr.mxu0 0.0
    %222 = vmatpush1.msra.mxu0 0.0
    %223 = vmatprep.subr.mxu0 0.0
    %224 = vmatpush1.msra.mxu0 0.0
    %225 = vmatprep.subr.mxu0 0.0
    %226 = vmatpush1.msra.mxu0 0.0
    %227 = vmatprep.subr.mxu0 0.0
    %228 = vmatpush1.msra.mxu0 0.0
    %229 = vmatprep.subr.mxu0 0.0
    %230 = vmatpush1.msra.mxu0 0.0
    %231 = vmatprep.subr.mxu0 0.0
    %232 = vmatpush1.msra.mxu0 0.0
    %233 = vmatprep.subr.mxu0 0.0
    %234 = vmatpush1.msra.mxu0 0.0
    %235 = vmatprep.subr.mxu0 0.0
    %236 = vmatpush1.msra.mxu0 0.0
    %237 = vmatprep.subr.mxu0 0.0
    %238 = vmatpush1.msra.mxu0 0.0
    %239 = vmatprep.subr.mxu0 0.0
    %240 = vmatpush1.msra.mxu0 0.0
    %241 = vmatprep.subr.mxu0 0.0
    %242 = vmatpush1.msra.mxu0 0.0
    %243 = vmatprep.subr.mxu0 0.0
    %244 = vmatpush1.msra.mxu0 0.0
    %245 = vmatprep.subr.mxu0 0.0
    %246 = vmatpush1.msra.mxu0 0.0
    %247 = vmatprep.subr.mxu0 0.0
    %248 = vmatpush1.msra.mxu0 0.0
    %249 = vmatprep.subr.mxu0 0.0
    %250 = vmatpush1.msra.mxu0 0.0
    %251 = vmatprep.subr.mxu0 0.0
    %252 = vmatpush1.msra.mxu0 0.0
    %253 = vmatprep.subr.mxu0 0.0
    %254 = vmatpush1.msra.mxu0 0.0
    %255 = vmatprep.subr.mxu0 0.0
    %256 = vmatpush1.msra.mxu0 0.0
    %257 = vmatprep.subr.mxu0 0.0
    %258 = vmatpush1.msra.mxu0 0.0
    %259 = vmatprep.mubr.f32.mxu0 0.0
    %260 = vmatmul.mubr.f32.gmra.mrb[0].mxu0 %v190
    %v261 = vpop.f32.mrb[0].mxu0
    %v262 = vadd.f32 %v186, %v261
    %v263 = vpop.f32.mrb[0].mxu0
    %264 = vmatprep.mubr.f32.mxu0 0.0
    %265 = vmatmul.mubr.f32.gmra.mrb[0].mxu0 %v193
    %v266 = vpop.f32.mrb[0].mxu0
    %v267 = vadd.f32 %v186, %v266
    %v268 = vpop.f32.mrb[0].mxu0
    %269 = vdwg.mxu0
    %v270 = vxor.u32 %v262, 2147483648
    %v271 = vmul.f32 %v270, 1.442695
    %v272 = vpow.pop %v271
    %v273 = vadd.f32 %v272, 1.0
    %v274 = vrcp.pop %v273
    %v275 = vmul.f32 1.0, %v274
    %v276 = vmul.f32 %v275, %v83
    %278 = vrot.lane.b32.xlu0 %v276, 64
    %v279 = vpop.permute.xlu0 %278
    %v281 = vadd.f32 %v262, %v279
    %v282 = vtanh.pop %v281
    %v283 = vsub.f32 1.0, %v275
    %285 = vrot.lane.b32.xlu0 %v282, 96
    %v286 = vpop.permute.xlu0 %285
    %v288 = vmul.f32 %v283, %v286
    %290 = vrot.lane.b32.xlu0 %v288, 96
    %v291 = vpop.permute.xlu0 %290
    %vm293 = vcmask 254976
    %294 = vst.msk [vmem:[#allocation2] sm:$0x3] %vm293, %v291
    %v295 = vpack.c.bf16 %v288, %v288
    %297 = vrot.lane.b32.xlu0 %v295, 96
    %v298 = vpop.permute.xlu0 %297
    %v303 = vunpack.c.l.b16 %v60
    %v304 = vunpack.c.l.b16 %v61
    %v305 = vunpack.c.l.b16 %v62
    %v306 = vunpack.c.l.b16 %v63
    %v307 = vpack.c.b16 %v304, %v303
    %v308 = vpack.c.b16 %v306, %v305
    %vm311 = vcmask 261120
    %v313 = vsel %vm311, %v298, 0
    %315 = vmatprep.subr.bf16.mxu0 0
    %316 = vmatpush1.bf16.msra.mxu0 %v307
    %317 = vmatprep.subr.bf16.mxu0 0
    %318 = vmatpush1.bf16.msra.mxu0 %v308
    %319 = vmatprep.subr.bf16.mxu0 0
    %320 = vmatpush1.bf16.msra.mxu0 0
    %321 = vmatprep.subr.bf16.mxu0 0
    %322 = vmatpush1.bf16.msra.mxu0 0
    %323 = vmatprep.subr.bf16.mxu0 0
    %324 = vmatpush1.bf16.msra.mxu0 0
    %325 = vmatprep.subr.bf16.mxu0 0
    %326 = vmatpush1.bf16.msra.mxu0 0
    %327 = vmatprep.subr.bf16.mxu0 0
    %328 = vmatpush1.bf16.msra.mxu0 0
    %329 = vmatprep.subr.bf16.mxu0 0
    %330 = vmatpush1.bf16.msra.mxu0 0
    %331 = vmatprep.subr.bf16.mxu0 0
    %332 = vmatpush1.bf16.msra.mxu0 0
    %333 = vmatprep.subr.bf16.mxu0 0
    %334 = vmatpush1.bf16.msra.mxu0 0
    %335 = vmatprep.subr.bf16.mxu0 0
    %336 = vmatpush1.bf16.msra.mxu0 0
    %337 = vmatprep.subr.bf16.mxu0 0
    %338 = vmatpush1.bf16.msra.mxu0 0
    %339 = vmatprep.subr.bf16.mxu0 0
    %340 = vmatpush1.bf16.msra.mxu0 0
    %341 = vmatprep.subr.bf16.mxu0 0
    %342 = vmatpush1.bf16.msra.mxu0 0
    %343 = vmatprep.subr.bf16.mxu0 0
    %344 = vmatpush1.bf16.msra.mxu0 0
    %345 = vmatprep.subr.bf16.mxu0 0
    %346 = vmatpush1.bf16.msra.mxu0 0
    %347 = vmatprep.mubr.bf16.mxu0 0
    %348 = vmatmul.mubr.bf16.gmra.mrb[0].mxu0 %v313
    %v349 = vpop.f32.mrb[0].mxu0
    %v350 = vadd.f32 0.0, %v349
    %v351 = vpop.f32.mrb[0].mxu0
    %v352 = vpop.f32.mrb[0].mxu0
    %v353 = vpop.f32.mrb[0].mxu0
    %354 = vdwg.mxu0
    %v356 = vrot.slane %v350, 6
    %v358 = vadd.f32 %v262, %v356
    %v359 = vxor.u32 %v358, 2147483648
    %v360 = vmul.f32 %v359, 1.442695
    %v361 = vpow.pop %v360
    %v362 = vadd.f32 %v361, 1.0
    %v363 = vrcp.pop %v362
    %v364 = vmul.f32 1.0, %v363
    %365 = vrot.lane.b32.xlu0 %v83, 64
    %v366 = vpop.permute.xlu0 %365
    %v368 = vadd.f32 %v350, %v366
    %v370 = vrot.slane %v368, 6
    %371 = vrot.lane.b32.xlu0 %v370, 64
    %v372 = vpop.permute.xlu0 %371
    %v374 = vmul.f32 %v364, %v372
    %376 = vrot.lane.b32.xlu0 %v374, 64
    %v377 = vpop.permute.xlu0 %376
    %v379 = vadd.f32 %v262, %v377
    %v380 = vtanh.pop %v379
    %v381 = vsub.f32 1.0, %v364
    %383 = vrot.lane.b32.xlu0 %v380, 96
    %v384 = vpop.permute.xlu0 %383
    %v386 = vmul.f32 %v381, %v384
    %v387 = vrot.slane %v288, 6
    %v389 = vmul.f32 %v364, %v387
    %v390 = vadd.f32 %v386, %v389
    %392 = vrot.lane.b32.xlu0 %v390, 96
    %v393 = vpop.permute.xlu0 %392
    %vm395 = vcmask 257026
    %396 = vst.msk [vmem:[#allocation2] sm:$0xc] %vm395, %v393
    %v397 = vpack.c.bf16 %v390, %v390
    %v399 = vrot.slane %v397, 1
    %400 = vrot.lane.b32.xlu0 %v399, 96
    %v401 = vpop.permute.xlu0 %400
    %v403 = vsel %vm311, %v401, 0
    %405 = vmatprep.subr.bf16.mxu0 0
    %406 = vmatpush1.bf16.msra.mxu0 %v307
    %407 = vmatprep.subr.bf16.mxu0 0
    %408 = vmatpush1.bf16.msra.mxu0 %v308
    %409 = vmatprep.subr.bf16.mxu0 0
    %410 = vmatpush1.bf16.msra.mxu0 0
    %411 = vmatprep.subr.bf16.mxu0 0
    %412 = vmatpush1.bf16.msra.mxu0 0
    %413 = vmatprep.subr.bf16.mxu0 0
    %414 = vmatpush1.bf16.msra.mxu0 0
    %415 = vmatprep.subr.bf16.mxu0 0
    %416 = vmatpush1.bf16.msra.mxu0 0
    %417 = vmatprep.subr.bf16.mxu0 0
    %418 = vmatpush1.bf16.msra.mxu0 0
    %419 = vmatprep.subr.bf16.mxu0 0
    %420 = vmatpush1.bf16.msra.mxu0 0
    %421 = vmatprep.subr.bf16.mxu0 0
    %422 = vmatpush1.bf16.msra.mxu0 0
    %423 = vmatprep.subr.bf16.mxu0 0
    %424 = vmatpush1.bf16.msra.mxu0 0
    %425 = vmatprep.subr.bf16.mxu0 0
    %426 = vmatpush1.bf16.msra.mxu0 0
    %427 = vmatprep.subr.bf16.mxu0 0
    %428 = vmatpush1.bf16.msra.mxu0 0
    %429 = vmatprep.subr.bf16.mxu0 0
    %430 = vmatpush1.bf16.msra.mxu0 0
    %431 = vmatprep.subr.bf16.mxu0 0
    %432 = vmatpush1.bf16.msra.mxu0 0
    %433 = vmatprep.subr.bf16.mxu0 0
    %434 = vmatpush1.bf16.msra.mxu0 0
    %435 = vmatprep.subr.bf16.mxu0 0
    %436 = vmatpush1.bf16.msra.mxu0 0
    %437 = vmatprep.mubr.bf16.mxu0 0
    %438 = vmatmul.mubr.bf16.gmra.mrb[0].mxu0 %v403
    %v439 = vpop.f32.mrb[0].mxu0
    %v440 = vadd.f32 0.0, %v439
    %v441 = vpop.f32.mrb[0].mxu0
    %v442 = vpop.f32.mrb[0].mxu0
    %v443 = vpop.f32.mrb[0].mxu0
    %444 = vdwg.mxu0
    %v446 = vrot.slane %v440, 4
    %v448 = vadd.f32 %v262, %v446
    %v449 = vxor.u32 %v448, 2147483648
    %v450 = vmul.f32 %v449, 1.442695
    %v451 = vpow.pop %v450
    %v452 = vadd.f32 %v451, 1.0
    %v453 = vrcp.pop %v452
    %v454 = vmul.f32 1.0, %v453
    %v455 = vadd.f32 %v440, %v366
    %v457 = vrot.slane %v455, 4
    %458 = vrot.lane.b32.xlu0 %v457, 64
    %v459 = vpop.permute.xlu0 %458
    %v461 = vmul.f32 %v454, %v459
    %463 = vrot.lane.b32.xlu0 %v461, 64
    %v464 = vpop.permute.xlu0 %463
    %v466 = vadd.f32 %v262, %v464
    %v467 = vtanh.pop %v466
    %v468 = vsub.f32 1.0, %v454
    %470 = vrot.lane.b32.xlu0 %v467, 96
    %v471 = vpop.permute.xlu0 %470
    %v473 = vmul.f32 %v468, %v471
    %v474 = vrot.slane %v390, 6
    %v476 = vmul.f32 %v454, %v474
    %v477 = vadd.f32 %v473, %v476
    %479 = vrot.lane.b32.xlu0 %v477, 96
    %v480 = vpop.permute.xlu0 %479
    %vm482 = vcmask 259076
    %483 = vst.msk [vmem:[#allocation2] sm:$0x30] %vm482, %v480
    %v484 = vpack.c.bf16 %v477, %v477
    %v486 = vrot.slane %v484, 2
    %487 = vrot.lane.b32.xlu0 %v486, 96
    %v488 = vpop.permute.xlu0 %487
    %v490 = vsel %vm311, %v488, 0
    %492 = vmatprep.subr.bf16.mxu0 0
    %493 = vmatpush1.bf16.msra.mxu0 %v307
    %494 = vmatprep.subr.bf16.mxu0 0
    %495 = vmatpush1.bf16.msra.mxu0 %v308
    %496 = vmatprep.subr.bf16.mxu0 0
    %497 = vmatpush1.bf16.msra.mxu0 0
    %498 = vmatprep.subr.bf16.mxu0 0
    %499 = vmatpush1.bf16.msra.mxu0 0
    %500 = vmatprep.subr.bf16.mxu0 0
    %501 = vmatpush1.bf16.msra.mxu0 0
    %502 = vmatprep.subr.bf16.mxu0 0
    %503 = vmatpush1.bf16.msra.mxu0 0
    %504 = vmatprep.subr.bf16.mxu0 0
    %505 = vmatpush1.bf16.msra.mxu0 0
    %506 = vmatprep.subr.bf16.mxu0 0
    %507 = vmatpush1.bf16.msra.mxu0 0
    %508 = vmatprep.subr.bf16.mxu0 0
    %509 = vmatpush1.bf16.msra.mxu0 0
    %510 = vmatprep.subr.bf16.mxu0 0
    %511 = vmatpush1.bf16.msra.mxu0 0
    %512 = vmatprep.subr.bf16.mxu0 0
    %513 = vmatpush1.bf16.msra.mxu0 0
    %514 = vmatprep.subr.bf16.mxu0 0
    %515 = vmatpush1.bf16.msra.mxu0 0
    %516 = vmatprep.subr.bf16.mxu0 0
    %517 = vmatpush1.bf16.msra.mxu0 0
    %518 = vmatprep.subr.bf16.mxu0 0
    %519 = vmatpush1.bf16.msra.mxu0 0
    %520 = vmatprep.subr.bf16.mxu0 0
    %521 = vmatpush1.bf16.msra.mxu0 0
    %522 = vmatprep.subr.bf16.mxu0 0
    %523 = vmatpush1.bf16.msra.mxu0 0
    %524 = vmatprep.mubr.bf16.mxu0 0
    %525 = vmatmul.mubr.bf16.gmra.mrb[0].mxu0 %v490
    %v526 = vpop.f32.mrb[0].mxu0
    %v527 = vadd.f32 0.0, %v526
    %v528 = vpop.f32.mrb[0].mxu0
    %v529 = vpop.f32.mrb[0].mxu0
    %v530 = vpop.f32.mrb[0].mxu0
    %531 = vdwg.mxu0
    %v533 = vrot.slane %v527, 2
    %v535 = vadd.f32 %v262, %v533
    %v536 = vxor.u32 %v535, 2147483648
    %v537 = vmul.f32 %v536, 1.442695
    %v538 = vpow.pop %v537
    %v539 = vadd.f32 %v538, 1.0
    %v540 = vrcp.pop %v539
    %v541 = vmul.f32 1.0, %v540
    %v542 = vadd.f32 %v527, %v366
    %v544 = vrot.slane %v542, 2
    %545 = vrot.lane.b32.xlu0 %v544, 64
    %v546 = vpop.permute.xlu0 %545
    %v548 = vmul.f32 %v541, %v546
    %550 = vrot.lane.b32.xlu0 %v548, 64
    %v551 = vpop.permute.xlu0 %550
    %v553 = vadd.f32 %v262, %v551
    %v554 = vtanh.pop %v553
    %v555 = vsub.f32 1.0, %v541
    %557 = vrot.lane.b32.xlu0 %v554, 96
    %v558 = vpop.permute.xlu0 %557
    %v560 = vmul.f32 %v555, %v558
    %v561 = vrot.slane %v477, 6
    %v563 = vmul.f32 %v541, %v561
    %v564 = vadd.f32 %v560, %v563
    %566 = vrot.lane.b32.xlu0 %v564, 96
    %v567 = vpop.permute.xlu0 %566
    %vm569 = vcmask 261126
    %570 = vst.msk [vmem:[#allocation2] sm:$0xc0] %vm569, %v567
    %v571 = vpack.c.bf16 %v564, %v564
    %v573 = vrot.slane %v571, 3
    %574 = vrot.lane.b32.xlu0 %v573, 96
    %v575 = vpop.permute.xlu0 %574
    %v577 = vsel %vm311, %v575, 0
    %579 = vmatprep.subr.bf16.mxu0 0
    %580 = vmatpush1.bf16.msra.mxu0 %v307
    %581 = vmatprep.subr.bf16.mxu0 0
    %582 = vmatpush1.bf16.msra.mxu0 %v308
    %583 = vmatprep.subr.bf16.mxu0 0
    %584 = vmatpush1.bf16.msra.mxu0 0
    %585 = vmatprep.subr.bf16.mxu0 0
    %586 = vmatpush1.bf16.msra.mxu0 0
    %587 = vmatprep.subr.bf16.mxu0 0
    %588 = vmatpush1.bf16.msra.mxu0 0
    %589 = vmatprep.subr.bf16.mxu0 0
    %590 = vmatpush1.bf16.msra.mxu0 0
    %591 = vmatprep.subr.bf16.mxu0 0
    %592 = vmatpush1.bf16.msra.mxu0 0
    %593 = vmatprep.subr.bf16.mxu0 0
    %594 = vmatpush1.bf16.msra.mxu0 0
    %595 = vmatprep.subr.bf16.mxu0 0
    %596 = vmatpush1.bf16.msra.mxu0 0
    %597 = vmatprep.subr.bf16.mxu0 0
    %598 = vmatpush1.bf16.msra.mxu0 0
    %599 = vmatprep.subr.bf16.mxu0 0
    %600 = vmatpush1.bf16.msra.mxu0 0
    %601 = vmatprep.subr.bf16.mxu0 0
    %602 = vmatpush1.bf16.msra.mxu0 0
    %603 = vmatprep.subr.bf16.mxu0 0
    %604 = vmatpush1.bf16.msra.mxu0 0
    %605 = vmatprep.subr.bf16.mxu0 0
    %606 = vmatpush1.bf16.msra.mxu0 0
    %607 = vmatprep.subr.bf16.mxu0 0
    %608 = vmatpush1.bf16.msra.mxu0 0
    %609 = vmatprep.subr.bf16.mxu0 0
    %610 = vmatpush1.bf16.msra.mxu0 0
    %611 = vmatprep.mubr.bf16.mxu0 0
    %612 = vmatmul.mubr.bf16.gmra.mrb[0].mxu0 %v577
    %v613 = vpop.f32.mrb[0].mxu0
    %v614 = vadd.f32 0.0, %v613
    %v615 = vpop.f32.mrb[0].mxu0
    %v616 = vpop.f32.mrb[0].mxu0
    %v617 = vpop.f32.mrb[0].mxu0
    %618 = vdwg.mxu0
    %v619 = vadd.f32 %v267, %v614
    %v620 = vxor.u32 %v619, 2147483648
    %v621 = vmul.f32 %v620, 1.442695
    %v622 = vpow.pop %v621
    %v623 = vadd.f32 %v622, 1.0
    %v624 = vrcp.pop %v623
    %v625 = vmul.f32 1.0, %v624
    %v626 = vadd.f32 %v614, %v366
    %628 = vrot.lane.b32.xlu0 %v626, 64
    %v629 = vpop.permute.xlu0 %628
    %v631 = vmul.f32 %v625, %v629
    %633 = vrot.lane.b32.xlu0 %v631, 64
    %v634 = vpop.permute.xlu0 %633
    %v636 = vadd.f32 %v267, %v634
    %v637 = vtanh.pop %v636
    %v638 = vsub.f32 1.0, %v625
    %640 = vrot.lane.b32.xlu0 %v637, 96
    %v641 = vpop.permute.xlu0 %640
    %v643 = vmul.f32 %v638, %v641
    %v644 = vrot.slane %v564, 6
    %v646 = vmul.f32 %v625, %v644
    %v647 = vadd.f32 %v643, %v646
    %649 = vrot.lane.b32.xlu0 %v647, 96
    %v650 = vpop.permute.xlu0 %649
    %652 = vst.msk [vmem:[#allocation2 + $0x8] sm:$0x3] %vm293, %v650
    %v653 = vpack.c.bf16 %v647, %v647
    %655 = vrot.lane.b32.xlu0 %v653, 96
    %v656 = vpop.permute.xlu0 %655
    %v658 = vsel %vm311, %v656, 0
    %660 = vmatprep.subr.bf16.mxu0 0
    %661 = vmatpush1.bf16.msra.mxu0 %v307
    %662 = vmatprep.subr.bf16.mxu0 0
    %663 = vmatpush1.bf16.msra.mxu0 %v308
    %664 = vmatprep.subr.bf16.mxu0 0
    %665 = vmatpush1.bf16.msra.mxu0 0
    %666 = vmatprep.subr.bf16.mxu0 0
    %667 = vmatpush1.bf16.msra.mxu0 0
    %668 = vmatprep.subr.bf16.mxu0 0
    %669 = vmatpush1.bf16.msra.mxu0 0
    %670 = vmatprep.subr.bf16.mxu0 0
    %671 = vmatpush1.bf16.msra.mxu0 0
    %672 = vmatprep.subr.bf16.mxu0 0
    %673 = vmatpush1.bf16.msra.mxu0 0
    %674 = vmatprep.subr.bf16.mxu0 0
    %675 = vmatpush1.bf16.msra.mxu0 0
    %676 = vmatprep.subr.bf16.mxu0 0
    %677 = vmatpush1.bf16.msra.mxu0 0
    %678 = vmatprep.subr.bf16.mxu0 0
    %679 = vmatpush1.bf16.msra.mxu0 0
    %680 = vmatprep.subr.bf16.mxu0 0
    %681 = vmatpush1.bf16.msra.mxu0 0
    %682 = vmatprep.subr.bf16.mxu0 0
    %683 = vmatpush1.bf16.msra.mxu0 0
    %684 = vmatprep.subr.bf16.mxu0 0
    %685 = vmatpush1.bf16.msra.mxu0 0
    %686 = vmatprep.subr.bf16.mxu0 0
    %687 = vmatpush1.bf16.msra.mxu0 0
    %688 = vmatprep.subr.bf16.mxu0 0
    %689 = vmatpush1.bf16.msra.mxu0 0
    %690 = vmatprep.subr.bf16.mxu0 0
    %691 = vmatpush1.bf16.msra.mxu0 0
    %692 = vmatprep.mubr.bf16.mxu0 0
    %693 = vmatmul.mubr.bf16.gmra.mrb[0].mxu0 %v658
    %v694 = vpop.f32.mrb[0].mxu0
    %v695 = vadd.f32 0.0, %v694
    %v696 = vpop.f32.mrb[0].mxu0
    %v697 = vpop.f32.mrb[0].mxu0
    %v698 = vpop.f32.mrb[0].mxu0
    %699 = vdwg.mxu0
    %v701 = vrot.slane %v695, 6
    %v703 = vadd.f32 %v267, %v701
    %v704 = vxor.u32 %v703, 2147483648
    %v705 = vmul.f32 %v704, 1.442695
    %v706 = vpow.pop %v705
    %v707 = vadd.f32 %v706, 1.0
    %v708 = vrcp.pop %v707
    %v709 = vmul.f32 1.0, %v708
    %v710 = vadd.f32 %v695, %v366
    %v712 = vrot.slane %v710, 6
    %713 = vrot.lane.b32.xlu0 %v712, 64
    %v714 = vpop.permute.xlu0 %713
    %v716 = vmul.f32 %v709, %v714
    %718 = vrot.lane.b32.xlu0 %v716, 64
    %v719 = vpop.permute.xlu0 %718
    %v721 = vadd.f32 %v267, %v719
    %v722 = vtanh.pop %v721
    %v723 = vsub.f32 1.0, %v709
    %725 = vrot.lane.b32.xlu0 %v722, 96
    %v726 = vpop.permute.xlu0 %725
    %v728 = vmul.f32 %v723, %v726
    %v729 = vrot.slane %v647, 6
    %v731 = vmul.f32 %v709, %v729
    %v732 = vadd.f32 %v728, %v731
    %734 = vrot.lane.b32.xlu0 %v732, 96
    %v735 = vpop.permute.xlu0 %734
    %737 = vst.msk [vmem:[#allocation2 + $0x8] sm:$0xc] %vm395, %v735
    %v738 = vpack.c.bf16 %v732, %v732
    %v740 = vrot.slane %v738, 1
    %741 = vrot.lane.b32.xlu0 %v740, 96
    %v742 = vpop.permute.xlu0 %741
    %v744 = vsel %vm311, %v742, 0
    %746 = vmatprep.subr.bf16.mxu0 0
    %747 = vmatpush1.bf16.msra.mxu0 %v307
    %748 = vmatprep.subr.bf16.mxu0 0
    %749 = vmatpush1.bf16.msra.mxu0 %v308
    %750 = vmatprep.subr.bf16.mxu0 0
    %751 = vmatpush1.bf16.msra.mxu0 0
    %752 = vmatprep.subr.bf16.mxu0 0
    %753 = vmatpush1.bf16.msra.mxu0 0
    %754 = vmatprep.subr.bf16.mxu0 0
    %755 = vmatpush1.bf16.msra.mxu0 0
    %756 = vmatprep.subr.bf16.mxu0 0
    %757 = vmatpush1.bf16.msra.mxu0 0
    %758 = vmatprep.subr.bf16.mxu0 0
    %759 = vmatpush1.bf16.msra.mxu0 0
    %760 = vmatprep.subr.bf16.mxu0 0
    %761 = vmatpush1.bf16.msra.mxu0 0
    %762 = vmatprep.subr.bf16.mxu0 0
    %763 = vmatpush1.bf16.msra.mxu0 0
    %764 = vmatprep.subr.bf16.mxu0 0
    %765 = vmatpush1.bf16.msra.mxu0 0
    %766 = vmatprep.subr.bf16.mxu0 0
    %767 = vmatpush1.bf16.msra.mxu0 0
    %768 = vmatprep.subr.bf16.mxu0 0
    %769 = vmatpush1.bf16.msra.mxu0 0
    %770 = vmatprep.subr.bf16.mxu0 0
    %771 = vmatpush1.bf16.msra.mxu0 0
    %772 = vmatprep.subr.bf16.mxu0 0
    %773 = vmatpush1.bf16.msra.mxu0 0
    %774 = vmatprep.subr.bf16.mxu0 0
    %775 = vmatpush1.bf16.msra.mxu0 0
    %776 = vmatprep.subr.bf16.mxu0 0
    %777 = vmatpush1.bf16.msra.mxu0 0
    %778 = vmatprep.mubr.bf16.mxu0 0
    %779 = vmatmul.mubr.bf16.gmra.mrb[0].mxu0 %v744
    %v780 = vpop.f32.mrb[0].mxu0
    %v781 = vadd.f32 0.0, %v780
    %v782 = vpop.f32.mrb[0].mxu0
    %v783 = vpop.f32.mrb[0].mxu0
    %v784 = vpop.f32.mrb[0].mxu0
    %785 = vdwg.mxu0
    %v787 = vrot.slane %v781, 4
    %v789 = vadd.f32 %v267, %v787
    %v790 = vxor.u32 %v789, 2147483648
    %v791 = vmul.f32 %v790, 1.442695
    %v792 = vpow.pop %v791
    %v793 = vadd.f32 %v792, 1.0
    %v794 = vrcp.pop %v793
    %v795 = vmul.f32 1.0, %v794
    %v796 = vadd.f32 %v781, %v366
    %v798 = vrot.slane %v796, 4
    %799 = vrot.lane.b32.xlu0 %v798, 64
    %v800 = vpop.permute.xlu0 %799
    %v802 = vmul.f32 %v795, %v800
    %804 = vrot.lane.b32.xlu0 %v802, 64
    %v805 = vpop.permute.xlu0 %804
    %v807 = vadd.f32 %v267, %v805
    %v808 = vtanh.pop %v807
    %v809 = vsub.f32 1.0, %v795
    %811 = vrot.lane.b32.xlu0 %v808, 96
    %v812 = vpop.permute.xlu0 %811
    %v814 = vmul.f32 %v809, %v812
    %v815 = vrot.slane %v732, 6
    %v817 = vmul.f32 %v795, %v815
    %v818 = vadd.f32 %v814, %v817
    %820 = vrot.lane.b32.xlu0 %v818, 96
    %v821 = vpop.permute.xlu0 %820
    %823 = vst.msk [vmem:[#allocation2 + $0x8] sm:$0x30] %vm482, %v821
    %v824 = vpack.c.bf16 %v818, %v818
    %v826 = vrot.slane %v824, 2
    %827 = vrot.lane.b32.xlu0 %v826, 96
    %v828 = vpop.permute.xlu0 %827
    %v830 = vsel %vm311, %v828, 0
    %832 = vmatprep.subr.bf16.mxu0 0
    %833 = vmatpush1.bf16.msra.mxu0 %v307
    %834 = vmatprep.subr.bf16.mxu0 0
    %835 = vmatpush1.bf16.msra.mxu0 %v308
    %836 = vmatprep.subr.bf16.mxu0 0
    %837 = vmatpush1.bf16.msra.mxu0 0
    %838 = vmatprep.subr.bf16.mxu0 0
    %839 = vmatpush1.bf16.msra.mxu0 0
    %840 = vmatprep.subr.bf16.mxu0 0
    %841 = vmatpush1.bf16.msra.mxu0 0
    %842 = vmatprep.subr.bf16.mxu0 0
    %843 = vmatpush1.bf16.msra.mxu0 0
    %844 = vmatprep.subr.bf16.mxu0 0
    %845 = vmatpush1.bf16.msra.mxu0 0
    %846 = vmatprep.subr.bf16.mxu0 0
    %847 = vmatpush1.bf16.msra.mxu0 0
    %848 = vmatprep.subr.bf16.mxu0 0
    %849 = vmatpush1.bf16.msra.mxu0 0
    %850 = vmatprep.subr.bf16.mxu0 0
    %851 = vmatpush1.bf16.msra.mxu0 0
    %852 = vmatprep.subr.bf16.mxu0 0
    %853 = vmatpush1.bf16.msra.mxu0 0
    %854 = vmatprep.subr.bf16.mxu0 0
    %855 = vmatpush1.bf16.msra.mxu0 0
    %856 = vmatprep.subr.bf16.mxu0 0
    %857 = vmatpush1.bf16.msra.mxu0 0
    %858 = vmatprep.subr.bf16.mxu0 0
    %859 = vmatpush1.bf16.msra.mxu0 0
    %860 = vmatprep.subr.bf16.mxu0 0
    %861 = vmatpush1.bf16.msra.mxu0 0
    %862 = vmatprep.subr.bf16.mxu0 0
    %863 = vmatpush1.bf16.msra.mxu0 0
    %864 = vmatprep.mubr.bf16.mxu0 0
    %865 = vmatmul.mubr.bf16.gmra.mrb[0].mxu0 %v830
    %v866 = vpop.f32.mrb[0].mxu0
    %v867 = vadd.f32 0.0, %v866
    %v868 = vpop.f32.mrb[0].mxu0
    %v869 = vpop.f32.mrb[0].mxu0
    %v870 = vpop.f32.mrb[0].mxu0
    %871 = vdwg.mxu0
    %v873 = vrot.slane %v867, 2
    %v875 = vadd.f32 %v267, %v873
    %v876 = vxor.u32 %v875, 2147483648
    %v877 = vmul.f32 %v876, 1.442695
    %v878 = vpow.pop %v877
    %v879 = vadd.f32 %v878, 1.0
    %v880 = vrcp.pop %v879
    %v881 = vmul.f32 1.0, %v880
    %v882 = vadd.f32 %v867, %v366
    %v884 = vrot.slane %v882, 2
    %885 = vrot.lane.b32.xlu0 %v884, 64
    %v886 = vpop.permute.xlu0 %885
    %v888 = vmul.f32 %v881, %v886
    %890 = vrot.lane.b32.xlu0 %v888, 64
    %v891 = vpop.permute.xlu0 %890
    %v893 = vadd.f32 %v267, %v891
    %v894 = vtanh.pop %v893
    %v895 = vsub.f32 1.0, %v881
    %897 = vrot.lane.b32.xlu0 %v894, 96
    %v898 = vpop.permute.xlu0 %897
    %v900 = vmul.f32 %v895, %v898
    %v901 = vrot.slane %v818, 6
    %v903 = vmul.f32 %v881, %v901
    %v904 = vadd.f32 %v900, %v903
    %906 = vrot.lane.b32.xlu0 %v904, 96
    %v907 = vpop.permute.xlu0 %906
    %909 = vst.msk [vmem:[#allocation2 + $0x8] sm:$0xc0] %vm569, %v907
    %v910 = vld [vmem:[#allocation2] sm:$0xff]
    %v911 = vld [vmem:[#allocation2 + $0x8] sm:$0xff]
    %v912 = vld [vmem:[%s12] sm:$0x1]
    %v914 = vlaneseq
    %v915 = vshrl.u32 %v914, 7
    %v916 = vsub.s32 0, %v915
    %v917 = vrot.slane %v912, %v916
    %v920 = vsel %vm311, %v910, 0
    %v923 = vsel %vm311, %v911, 0
    %925 = vmatprep.subr.mxu0 0.0
    %926 = vmatpush1.msra.mxu0 %v72
    %927 = vmatprep.subr.mxu0 0.0
    %928 = vmatpush1.msra.mxu0 %v73
    %929 = vmatprep.subr.mxu0 0.0
    %930 = vmatpush1.msra.mxu0 %v74
    %931 = vmatprep.subr.mxu0 0.0
    %932 = vmatpush1.msra.mxu0 %v75
    %933 = vmatprep.subr.mxu0 0.0
    %934 = vmatpush1.msra.mxu0 0.0
    %935 = vmatprep.subr.mxu0 0.0
    %936 = vmatpush1.msra.mxu0 0.0
    %937 = vmatprep.subr.mxu0 0.0
    %938 = vmatpush1.msra.mxu0 0.0
    %939 = vmatprep.subr.mxu0 0.0
    %940 = vmatpush1.msra.mxu0 0.0
    %941 = vmatprep.subr.mxu0 0.0
    %942 = vmatpush1.msra.mxu0 0.0
    %943 = vmatprep.subr.mxu0 0.0
    %944 = vmatpush1.msra.mxu0 0.0
    %945 = vmatprep.subr.mxu0 0.0
    %946 = vmatpush1.msra.mxu0 0.0
    %947 = vmatprep.subr.mxu0 0.0
    %948 = vmatpush1.msra.mxu0 0.0
    %949 = vmatprep.subr.mxu0 0.0
    %950 = vmatpush1.msra.mxu0 0.0
    %951 = vmatprep.subr.mxu0 0.0
    %952 = vmatpush1.msra.mxu0 0.0
    %953 = vmatprep.subr.mxu0 0.0
    %954 = vmatpush1.msra.mxu0 0.0
    %955 = vmatprep.subr.mxu0 0.0
    %956 = vmatpush1.msra.mxu0 0.0
    %957 = vmatprep.subr.mxu0 0.0
    %958 = vmatpush1.msra.mxu0 0.0
    %959 = vmatprep.subr.mxu0 0.0
    %960 = vmatpush1.msra.mxu0 0.0
    %961 = vmatprep.subr.mxu0 0.0
    %962 = vmatpush1.msra.mxu0 0.0
    %963 = vmatprep.subr.mxu0 0.0
    %964 = vmatpush1.msra.mxu0 0.0
    %965 = vmatprep.subr.mxu0 0.0
    %966 = vmatpush1.msra.mxu0 0.0
    %967 = vmatprep.subr.mxu0 0.0
    %968 = vmatpush1.msra.mxu0 0.0
    %969 = vmatprep.subr.mxu0 0.0
    %970 = vmatpush1.msra.mxu0 0.0
    %971 = vmatprep.subr.mxu0 0.0
    %972 = vmatpush1.msra.mxu0 0.0
    %973 = vmatprep.subr.mxu0 0.0
    %974 = vmatpush1.msra.mxu0 0.0
    %975 = vmatprep.subr.mxu0 0.0
    %976 = vmatpush1.msra.mxu0 0.0
    %977 = vmatprep.subr.mxu0 0.0
    %978 = vmatpush1.msra.mxu0 0.0
    %979 = vmatprep.subr.mxu0 0.0
    %980 = vmatpush1.msra.mxu0 0.0
    %981 = vmatprep.subr.mxu0 0.0
    %982 = vmatpush1.msra.mxu0 0.0
    %983 = vmatprep.subr.mxu0 0.0
    %984 = vmatpush1.msra.mxu0 0.0
    %985 = vmatprep.subr.mxu0 0.0
    %986 = vmatpush1.msra.mxu0 0.0
    %987 = vmatprep.subr.mxu0 0.0
    %988 = vmatpush1.msra.mxu0 0.0
    %989 = vmatprep.mubr.f32.mxu0 0.0
    %990 = vmatmul.mubr.f32.gmra.mrb[0].mxu0 %v920
    %v991 = vpop.f32.mrb[0].mxu0
    %v992 = vadd.f32 %v917, %v991
    %v993 = vpop.f32.mrb[0].mxu0
    %994 = vmatprep.mubr.f32.mxu0 0.0
    %995 = vmatmul.mubr.f32.gmra.mrb[0].mxu0 %v923
    %v996 = vpop.f32.mrb[0].mxu0
    %v997 = vadd.f32 %v917, %v996
    %v998 = vpop.f32.mrb[0].mxu0
    %999 = vdwg.mxu0
    %v1000 = vadd.f32 %v992, %v174
    %v1001 = vadd.f32 %v997, %v179
    %1002 = vst.msk [vmem:[#allocation3] sm:$0xff] %vm188, %v1000
    %1003 = vst.msk [vmem:[#allocation3 + $0x8] sm:$0xff] %vm188, %v1001
    %v1004 = vld [vmem:[%s1] sm:$0x3]
    %v1006 = vsel %vm100, %v1004, 0
    %1008 = vmatprep.subr.mxu0 0.0
    %1009 = vmatpush1.msra.mxu0 %v48
    %1010 = vmatprep.subr.mxu0 0.0
    %1011 = vmatpush1.msra.mxu0 %v49
    %1012 = vmatprep.subr.mxu0 0.0
    %1013 = vmatpush1.msra.mxu0 %v50
    %1014 = vmatprep.subr.mxu0 0.0
    %1015 = vmatpush1.msra.mxu0 %v51
    %1016 = vmatprep.subr.mxu0 0.0
    %1017 = vmatpush1.msra.mxu0 %v52
    %1018 = vmatprep.subr.mxu0 0.0
    %1019 = vmatpush1.msra.mxu0 %v53
    %1020 = vmatprep.subr.mxu0 0.0
    %1021 = vmatpush1.msra.mxu0 %v54
    %1022 = vmatprep.subr.mxu0 0.0
    %1023 = vmatpush1.msra.mxu0 %v55
    %1024 = vmatprep.subr.mxu0 0.0
    %1025 = vmatpush1.msra.mxu0 %v56
    %1026 = vmatprep.subr.mxu0 0.0
    %1027 = vmatpush1.msra.mxu0 0.0
    %1028 = vmatprep.subr.mxu0 0.0
    %1029 = vmatpush1.msra.mxu0 0.0
    %1030 = vmatprep.subr.mxu0 0.0
    %1031 = vmatpush1.msra.mxu0 0.0
    %1032 = vmatprep.subr.mxu0 0.0
    %1033 = vmatpush1.msra.mxu0 0.0
    %1034 = vmatprep.subr.mxu0 0.0
    %1035 = vmatpush1.msra.mxu0 0.0
    %1036 = vmatprep.subr.mxu0 0.0
    %1037 = vmatpush1.msra.mxu0 0.0
    %1038 = vmatprep.subr.mxu0 0.0
    %1039 = vmatpush1.msra.mxu0 0.0
    %1040 = vmatprep.subr.mxu0 0.0
    %1041 = vmatpush1.msra.mxu0 0.0
    %1042 = vmatprep.subr.mxu0 0.0
    %1043 = vmatpush1.msra.mxu0 0.0
    %1044 = vmatprep.subr.mxu0 0.0
    %1045 = vmatpush1.msra.mxu0 0.0
    %1046 = vmatprep.subr.mxu0 0.0
    %1047 = vmatpush1.msra.mxu0 0.0
    %1048 = vmatprep.subr.mxu0 0.0
    %1049 = vmatpush1.msra.mxu0 0.0
    %1050 = vmatprep.subr.mxu0 0.0
    %1051 = vmatpush1.msra.mxu0 0.0
    %1052 = vmatprep.subr.mxu0 0.0
    %1053 = vmatpush1.msra.mxu0 0.0
    %1054 = vmatprep.subr.mxu0 0.0
    %1055 = vmatpush1.msra.mxu0 0.0
    %1056 = vmatprep.subr.mxu0 0.0
    %1057 = vmatpush1.msra.mxu0 0.0
    %1058 = vmatprep.subr.mxu0 0.0
    %1059 = vmatpush1.msra.mxu0 0.0
    %1060 = vmatprep.subr.mxu0 0.0
    %1061 = vmatpush1.msra.mxu0 0.0
    %1062 = vmatprep.subr.mxu0 0.0
    %1063 = vmatpush1.msra.mxu0 0.0
    %1064 = vmatprep.subr.mxu0 0.0
    %1065 = vmatpush1.msra.mxu0 0.0
    %1066 = vmatprep.subr.mxu0 0.0
    %1067 = vmatpush1.msra.mxu0 0.0
    %1068 = vmatprep.subr.mxu0 0.0
    %1069 = vmatpush1.msra.mxu0 0.0
    %1070 = vmatprep.subr.mxu0 0.0
    %1071 = vmatpush1.msra.mxu0 0.0
    %1072 = vmatprep.mubr.f32.mxu0 0.0
    %1073 = vmatmul.mubr.f32.gmra.mrb[0].mxu0 %v1006
    %v1074 = vpop.f32.mrb[0].mxu0
    %v1075 = vadd.f32 %v98, %v1074
    %v1076 = vpop.f32.mrb[0].mxu0
    %1077 = vdwg.mxu0
    %v1079 = vsel %vm188, %v1075, 0
    %1081 = vmatprep.subr.mxu0 0.0
    %1082 = vmatpush1.msra.mxu0 %v58
    %1083 = vmatprep.subr.mxu0 0.0
    %1084 = vmatpush1.msra.mxu0 %v59
    %1085 = vmatprep.subr.mxu0 0.0
    %1086 = vmatpush1.msra.mxu0 0.0
    %1087 = vmatprep.subr.mxu0 0.0
    %1088 = vmatpush1.msra.mxu0 0.0
    %1089 = vmatprep.subr.mxu0 0.0
    %1090 = vmatpush1.msra.mxu0 0.0
    %1091 = vmatprep.subr.mxu0 0.0
    %1092 = vmatpush1.msra.mxu0 0.0
    %1093 = vmatprep.subr.mxu0 0.0
    %1094 = vmatpush1.msra.mxu0 0.0
    %1095 = vmatprep.subr.mxu0 0.0
    %1096 = vmatpush1.msra.mxu0 0.0
    %1097 = vmatprep.subr.mxu0 0.0
    %1098 = vmatpush1.msra.mxu0 0.0
    %1099 = vmatprep.subr.mxu0 0.0
    %1100 = vmatpush1.msra.mxu0 0.0
    %1101 = vmatprep.subr.mxu0 0.0
    %1102 = vmatpush1.msra.mxu0 0.0
    %1103 = vmatprep.subr.mxu0 0.0
    %1104 = vmatpush1.msra.mxu0 0.0
    %1105 = vmatprep.subr.mxu0 0.0
    %1106 = vmatpush1.msra.mxu0 0.0
    %1107 = vmatprep.subr.mxu0 0.0
    %1108 = vmatpush1.msra.mxu0 0.0
    %1109 = vmatprep.subr.mxu0 0.0
    %1110 = vmatpush1.msra.mxu0 0.0
    %1111 = vmatprep.subr.mxu0 0.0
    %1112 = vmatpush1.msra.mxu0 0.0
    %1113 = vmatprep.subr.mxu0 0.0
    %1114 = vmatpush1.msra.mxu0 0.0
    %1115 = vmatprep.subr.mxu0 0.0
    %1116 = vmatpush1.msra.mxu0 0.0
    %1117 = vmatprep.subr.mxu0 0.0
    %1118 = vmatpush1.msra.mxu0 0.0
    %1119 = vmatprep.subr.mxu0 0.0
    %1120 = vmatpush1.msra.mxu0 0.0
    %1121 = vmatprep.subr.mxu0 0.0
    %1122 = vmatpush1.msra.mxu0 0.0
    %1123 = vmatprep.subr.mxu0 0.0
    %1124 = vmatpush1.msra.mxu0 0.0
    %1125 = vmatprep.subr.mxu0 0.0
    %1126 = vmatpush1.msra.mxu0 0.0
    %1127 = vmatprep.subr.mxu0 0.0
    %1128 = vmatpush1.msra.mxu0 0.0
    %1129 = vmatprep.subr.mxu0 0.0
    %1130 = vmatpush1.msra.mxu0 0.0
    %1131 = vmatprep.subr.mxu0 0.0
    %1132 = vmatpush1.msra.mxu0 0.0
    %1133 = vmatprep.subr.mxu0 0.0
    %1134 = vmatpush1.msra.mxu0 0.0
    %1135 = vmatprep.subr.mxu0 0.0
    %1136 = vmatpush1.msra.mxu0 0.0
    %1137 = vmatprep.subr.mxu0 0.0
    %1138 = vmatpush1.msra.mxu0 0.0
    %1139 = vmatprep.subr.mxu0 0.0
    %1140 = vmatpush1.msra.mxu0 0.0
    %1141 = vmatprep.subr.mxu0 0.0
    %1142 = vmatpush1.msra.mxu0 0.0
    %1143 = vmatprep.subr.mxu0 0.0
    %1144 = vmatpush1.msra.mxu0 0.0
    %1145 = vmatprep.mubr.f32.mxu0 0.0
    %1146 = vmatmul.mubr.f32.gmra.mrb[0].mxu0 %v1079
    %v1147 = vpop.f32.mrb[0].mxu0
    %v1148 = vadd.f32 %v186, %v1147
    %v1149 = vpop.f32.mrb[0].mxu0
    %1150 = vdwg.mxu0
    %v1151 = vpack.c.bf16 %v904, %v904
    %v1153 = vrot.slane %v1151, 3
    %1154 = vrot.lane.b32.xlu0 %v1153, 96
    %v1155 = vpop.permute.xlu0 %1154
    %v1160 = vunpack.c.l.b16 %v64
    %v1161 = vunpack.c.l.b16 %v65
    %v1162 = vunpack.c.l.b16 %v66
    %v1163 = vunpack.c.l.b16 %v67
    %v1164 = vpack.c.b16 %v1161, %v1160
    %v1165 = vpack.c.b16 %v1163, %v1162
    %v1169 = vsel %vm311, %v1155, 0
    %1171 = vmatprep.subr.bf16.mxu0 0
    %1172 = vmatpush1.bf16.msra.mxu0 %v1164
    %1173 = vmatprep.subr.bf16.mxu0 0
    %1174 = vmatpush1.bf16.msra.mxu0 %v1165
    %1175 = vmatprep.subr.bf16.mxu0 0
    %1176 = vmatpush1.bf16.msra.mxu0 0
    %1177 = vmatprep.subr.bf16.mxu0 0
    %1178 = vmatpush1.bf16.msra.mxu0 0
    %1179 = vmatprep.subr.bf16.mxu0 0
    %1180 = vmatpush1.bf16.msra.mxu0 0
    %1181 = vmatprep.subr.bf16.mxu0 0
    %1182 = vmatpush1.bf16.msra.mxu0 0
    %1183 = vmatprep.subr.bf16.mxu0 0
    %1184 = vmatpush1.bf16.msra.mxu0 0
    %1185 = vmatprep.subr.bf16.mxu0 0
    %1186 = vmatpush1.bf16.msra.mxu0 0
    %1187 = vmatprep.subr.bf16.mxu0 0
    %1188 = vmatpush1.bf16.msra.mxu0 0
    %1189 = vmatprep.subr.bf16.mxu0 0
    %1190 = vmatpush1.bf16.msra.mxu0 0
    %1191 = vmatprep.subr.bf16.mxu0 0
    %1192 = vmatpush1.bf16.msra.mxu0 0
    %1193 = vmatprep.subr.bf16.mxu0 0
    %1194 = vmatpush1.bf16.msra.mxu0 0
    %1195 = vmatprep.subr.bf16.mxu0 0
    %1196 = vmatpush1.bf16.msra.mxu0 0
    %1197 = vmatprep.subr.bf16.mxu0 0
    %1198 = vmatpush1.bf16.msra.mxu0 0
    %1199 = vmatprep.subr.bf16.mxu0 0
    %1200 = vmatpush1.bf16.msra.mxu0 0
    %1201 = vmatprep.subr.bf16.mxu0 0
    %1202 = vmatpush1.bf16.msra.mxu0 0
    %1203 = vmatprep.mubr.bf16.mxu0 0
    %1204 = vmatmul.mubr.bf16.gmra.mrb[0].mxu0 %v1169
    %v1205 = vpop.f32.mrb[0].mxu0
    %v1206 = vadd.f32 0.0, %v1205
    %v1207 = vpop.f32.mrb[0].mxu0
    %v1208 = vpop.f32.mrb[0].mxu0
    %v1209 = vpop.f32.mrb[0].mxu0
    %1210 = vdwg.mxu0
    %v1211 = vadd.f32 %v1148, %v1206
    %v1212 = vxor.u32 %v1211, 2147483648
    %v1213 = vmul.f32 %v1212, 1.442695
    %v1214 = vpow.pop %v1213
    %v1215 = vadd.f32 %v1214, 1.0
    %v1216 = vrcp.pop %v1215
    %v1217 = vmul.f32 1.0, %v1216
    %1218 = vrot.lane.b32.xlu0 %v83, 96
    %v1219 = vpop.permute.xlu0 %1218
    %v1221 = vadd.f32 %v1206, %v1219
    %1223 = vrot.lane.b32.xlu0 %v1221, 32
    %v1224 = vpop.permute.xlu0 %1223
    %v1226 = vmul.f32 %v1217, %v1224
    %1228 = vrot.lane.b32.xlu0 %v1226, 64
    %v1229 = vpop.permute.xlu0 %1228
    %v1231 = vadd.f32 %v1211, %v1229
    %v1232 = vtanh.pop %v1231
    %v1233 = vsub.f32 1.0, %v1217
    %1235 = vrot.lane.b32.xlu0 %v1232, 96
    %v1236 = vpop.permute.xlu0 %1235
    %v1238 = vmul.f32 %v1233, %v1236
    %v1239 = vrot.slane %v904, 6
    %v1241 = vmul.f32 %v1217, %v1239
    %v1242 = vadd.f32 %v1238, %v1241
    %v1243 = vpack.c.bf16 %v1242, %v1242
    %1245 = vrot.lane.b32.xlu0 %v1243, 96
    %v1246 = vpop.permute.xlu0 %1245
    %v1251 = vunpack.c.l.b16 %v68
    %v1252 = vunpack.c.h.b16 %v68
    %v1253 = vunpack.c.l.b16 %v69
    %v1254 = vunpack.c.h.b16 %v69
    %v1255 = vunpack.c.l.b16 %v70
    %v1256 = vunpack.c.h.b16 %v70
    %v1257 = vunpack.c.l.b16 %v71
    %v1258 = vunpack.c.h.b16 %v71
    %v1259 = vpack.c.b16 %v1253, %v1251
    %v1260 = vpack.c.b16 %v1254, %v1252
    %v1261 = vpack.c.b16 %v1257, %v1255
    %v1262 = vpack.c.b16 %v1258, %v1256
    %v1268 = vsel %vm311, %v1246, 0
    %1270 = vmatprep.subr.bf16.mxu0 %v1260
    %1271 = vmatpush1.bf16.msra.mxu0 %v1259
    %1272 = vmatprep.subr.bf16.mxu0 %v1262
    %1273 = vmatpush1.bf16.msra.mxu0 %v1261
    %1274 = vmatprep.subr.bf16.mxu0 0
    %1275 = vmatpush1.bf16.msra.mxu0 0
    %1276 = vmatprep.subr.bf16.mxu0 0
    %1277 = vmatpush1.bf16.msra.mxu0 0
    %1278 = vmatprep.subr.bf16.mxu0 0
    %1279 = vmatpush1.bf16.msra.mxu0 0
    %1280 = vmatprep.subr.bf16.mxu0 0
    %1281 = vmatpush1.bf16.msra.mxu0 0
    %1282 = vmatprep.subr.bf16.mxu0 0
    %1283 = vmatpush1.bf16.msra.mxu0 0
    %1284 = vmatprep.subr.bf16.mxu0 0
    %1285 = vmatpush1.bf16.msra.mxu0 0
    %1286 = vmatprep.subr.bf16.mxu0 0
    %1287 = vmatpush1.bf16.msra.mxu0 0
    %1288 = vmatprep.subr.bf16.mxu0 0
    %1289 = vmatpush1.bf16.msra.mxu0 0
    %1290 = vmatprep.subr.bf16.mxu0 0
    %1291 = vmatpush1.bf16.msra.mxu0 0
    %1292 = vmatprep.subr.bf16.mxu0 0
    %1293 = vmatpush1.bf16.msra.mxu0 0
    %1294 = vmatprep.subr.bf16.mxu0 0
    %1295 = vmatpush1.bf16.msra.mxu0 0
    %1296 = vmatprep.subr.bf16.mxu0 0
    %1297 = vmatpush1.bf16.msra.mxu0 0
    %1298 = vmatprep.subr.bf16.mxu0 0
    %1299 = vmatpush1.bf16.msra.mxu0 0
    %1300 = vmatprep.subr.bf16.mxu0 0
    %1301 = vmatpush1.bf16.msra.mxu0 0
    %1302 = vmatprep.mubr.bf16.mxu0 0
    %1303 = vmatmul.mubr.bf16.gmra.mrb[0].mxu0 %v1268
    %v1304 = vpop.f32.mrb[0].mxu0
    %v1305 = vadd.f32 0.0, %v1304
    %v1306 = vpop.f32.mrb[0].mxu0
    %v1307 = vadd.f32 0.0, %v1306
    %v1308 = vpop.f32.mrb[0].mxu0
    %v1309 = vpop.f32.mrb[0].mxu0
    %1310 = vdwg.mxu0
    %v1311 = vadd.f32 %v1307, %v90
    %v1312 = vadd.f32 %v1311, %v1075
    %vm1313 = vcmask 123904
    %1314 = vst.msk [vmem:[%s14] sm:$0x3] %vm1313, %v1312
    %v1316 = vlaneseq
    %v1317 = vshrl.u32 %v1316, 7
    %v1318 = vsub.s32 0, %v1317
    %v1319 = vrot.slane %v77, %v1318
    %1321 = vmatprep.subr.mxu0 0.0
    %1322 = vmatpush1.msra.mxu0 %v58
    %1323 = vmatprep.subr.mxu0 0.0
    %1324 = vmatpush1.msra.mxu0 %v59
    %1325 = vmatprep.subr.mxu0 0.0
    %1326 = vmatpush1.msra.mxu0 0.0
    %1327 = vmatprep.subr.mxu0 0.0
    %1328 = vmatpush1.msra.mxu0 0.0
    %1329 = vmatprep.subr.mxu0 0.0
    %1330 = vmatpush1.msra.mxu0 0.0
    %1331 = vmatprep.subr.mxu0 0.0
    %1332 = vmatpush1.msra.mxu0 0.0
    %1333 = vmatprep.subr.mxu0 0.0
    %1334 = vmatpush1.msra.mxu0 0.0
    %1335 = vmatprep.subr.mxu0 0.0
    %1336 = vmatpush1.msra.mxu0 0.0
    %1337 = vmatprep.subr.mxu0 0.0
    %1338 = vmatpush1.msra.mxu0 0.0
    %1339 = vmatprep.subr.mxu0 0.0
    %1340 = vmatpush1.msra.mxu0 0.0
    %1341 = vmatprep.subr.mxu0 0.0
    %1342 = vmatpush1.msra.mxu0 0.0
    %1343 = vmatprep.subr.mxu0 0.0
    %1344 = vmatpush1.msra.mxu0 0.0
    %1345 = vmatprep.subr.mxu0 0.0
    %1346 = vmatpush1.msra.mxu0 0.0
    %1347 = vmatprep.subr.mxu0 0.0
    %1348 = vmatpush1.msra.mxu0 0.0
    %1349 = vmatprep.subr.mxu0 0.0
    %1350 = vmatpush1.msra.mxu0 0.0
    %1351 = vmatprep.subr.mxu0 0.0
    %1352 = vmatpush1.msra.mxu0 0.0
    %1353 = vmatprep.subr.mxu0 0.0
    %1354 = vmatpush1.msra.mxu0 0.0
    %1355 = vmatprep.subr.mxu0 0.0
    %1356 = vmatpush1.msra.mxu0 0.0
    %1357 = vmatprep.subr.mxu0 0.0
    %1358 = vmatpush1.msra.mxu0 0.0
    %1359 = vmatprep.subr.mxu0 0.0
    %1360 = vmatpush1.msra.mxu0 0.0
    %1361 = vmatprep.subr.mxu0 0.0
    %1362 = vmatpush1.msra.mxu0 0.0
    %1363 = vmatprep.subr.mxu0 0.0
    %1364 = vmatpush1.msra.mxu0 0.0
    %1365 = vmatprep.subr.mxu0 0.0
    %1366 = vmatpush1.msra.mxu0 0.0
    %1367 = vmatprep.subr.mxu0 0.0
    %1368 = vmatpush1.msra.mxu0 0.0
    %1369 = vmatprep.subr.mxu0 0.0
    %1370 = vmatpush1.msra.mxu0 0.0
    %1371 = vmatprep.subr.mxu0 0.0
    %1372 = vmatpush1.msra.mxu0 0.0
    %1373 = vmatprep.subr.mxu0 0.0
    %1374 = vmatpush1.msra.mxu0 0.0
    %1375 = vmatprep.subr.mxu0 0.0
    %1376 = vmatpush1.msra.mxu0 0.0
    %1377 = vmatprep.subr.mxu0 0.0
    %1378 = vmatpush1.msra.mxu0 0.0
    %1379 = vmatprep.subr.mxu0 0.0
    %1380 = vmatpush1.msra.mxu0 0.0
    %1381 = vmatprep.subr.mxu0 0.0
    %1382 = vmatpush1.msra.mxu0 0.0
    %1383 = vmatprep.subr.mxu0 0.0
    %1384 = vmatpush1.msra.mxu0 0.0
    %1385 = vmatprep.mubr.f32.mxu0 0.0
    %1386 = vmatmul.mubr.f32.gmra.mrb[0].mxu0 %v1079
    %v1387 = vpop.f32.mrb[0].mxu0
    %v1388 = vadd.f32 %v1319, %v1387
    %v1389 = vpop.f32.mrb[0].mxu0
    %1390 = vdwg.mxu0
    %v1391 = vadd.f32 %v1388, %v1305
    %v1392 = vxor.u32 %v1391, 2147483648
    %v1393 = vmul.f32 %v1392, 1.442695
    %v1394 = vpow.pop %v1393
    %v1395 = vadd.f32 %v1394, 1.0
    %v1396 = vrcp.pop %v1395
    %v1397 = vmul.f32 1.0, %v1396
    %v1398 = vadd.f32 %v1305, %v1219
    %1400 = vrot.lane.b32.xlu0 %v1398, 32
    %v1401 = vpop.permute.xlu0 %1400
    %v1403 = vmul.f32 %v1397, %v1401
    %1405 = vrot.lane.b32.xlu0 %v1403, 64
    %v1406 = vpop.permute.xlu0 %1405
    %v1408 = vadd.f32 %v1391, %v1406
    %v1409 = vtanh.pop %v1408
    %v1410 = vsub.f32 1.0, %v1397
    %1412 = vrot.lane.b32.xlu0 %v1409, 96
    %v1413 = vpop.permute.xlu0 %1412
    %v1415 = vmul.f32 %v1410, %v1413
    %v1416 = vmul.f32 %v1397, %v1242
    %v1417 = vadd.f32 %v1415, %v1416
    %v1418 = vpack.c.bf16 %v1417, %v1417
    %1420 = vrot.lane.b32.xlu0 %v1418, 96
    %v1421 = vpop.permute.xlu0 %1420
    %v1423 = vsel %vm311, %v1421, 0
    %1425 = vmatprep.subr.bf16.mxu0 %v1260
    %1426 = vmatpush1.bf16.msra.mxu0 %v1259
    %1427 = vmatprep.subr.bf16.mxu0 %v1262
    %1428 = vmatpush1.bf16.msra.mxu0 %v1261
    %1429 = vmatprep.subr.bf16.mxu0 0
    %1430 = vmatpush1.bf16.msra.mxu0 0
    %1431 = vmatprep.subr.bf16.mxu0 0
    %1432 = vmatpush1.bf16.msra.mxu0 0
    %1433 = vmatprep.subr.bf16.mxu0 0
    %1434 = vmatpush1.bf16.msra.mxu0 0
    %1435 = vmatprep.subr.bf16.mxu0 0
    %1436 = vmatpush1.bf16.msra.mxu0 0
    %1437 = vmatprep.subr.bf16.mxu0 0
    %1438 = vmatpush1.bf16.msra.mxu0 0
    %1439 = vmatprep.subr.bf16.mxu0 0
    %1440 = vmatpush1.bf16.msra.mxu0 0
    %1441 = vmatprep.subr.bf16.mxu0 0
    %1442 = vmatpush1.bf16.msra.mxu0 0
    %1443 = vmatprep.subr.bf16.mxu0 0
    %1444 = vmatpush1.bf16.msra.mxu0 0
    %1445 = vmatprep.subr.bf16.mxu0 0
    %1446 = vmatpush1.bf16.msra.mxu0 0
    %1447 = vmatprep.subr.bf16.mxu0 0
    %1448 = vmatpush1.bf16.msra.mxu0 0
    %1449 = vmatprep.subr.bf16.mxu0 0
    %1450 = vmatpush1.bf16.msra.mxu0 0
    %1451 = vmatprep.subr.bf16.mxu0 0
    %1452 = vmatpush1.bf16.msra.mxu0 0
    %1453 = vmatprep.subr.bf16.mxu0 0
    %1454 = vmatpush1.bf16.msra.mxu0 0
    %1455 = vmatprep.subr.bf16.mxu0 0
    %1456 = vmatpush1.bf16.msra.mxu0 0
    %1457 = vmatprep.mubr.bf16.mxu0 0
    %1458 = vmatmul.mubr.bf16.gmra.mrb[0].mxu0 %v1423
    %v1459 = vpop.f32.mrb[0].mxu0
    %v1460 = vadd.f32 0.0, %v1459
    %v1461 = vpop.f32.mrb[0].mxu0
    %v1462 = vadd.f32 0.0, %v1461
    %v1463 = vpop.f32.mrb[0].mxu0
    %v1464 = vpop.f32.mrb[0].mxu0
    %1465 = vdwg.mxu0
    %v1466 = vadd.f32 %v1462, %v90
    %v1467 = vadd.f32 %v1466, %v1312
    %1468 = vst.msk [vmem:[%s14 + $0x2] sm:$0x3] %vm1313, %v1467
    %v1470 = vsel %vm188, %v1312, 0
    %1472 = vmatprep.subr.mxu0 0.0
    %1473 = vmatpush1.msra.mxu0 %v58
    %1474 = vmatprep.subr.mxu0 0.0
    %1475 = vmatpush1.msra.mxu0 %v59
    %1476 = vmatprep.subr.mxu0 0.0
    %1477 = vmatpush1.msra.mxu0 0.0
    %1478 = vmatprep.subr.mxu0 0.0
    %1479 = vmatpush1.msra.mxu0 0.0
    %1480 = vmatprep.subr.mxu0 0.0
    %1481 = vmatpush1.msra.mxu0 0.0
    %1482 = vmatprep.subr.mxu0 0.0
    %1483 = vmatpush1.msra.mxu0 0.0
    %1484 = vmatprep.subr.mxu0 0.0
    %1485 = vmatpush1.msra.mxu0 0.0
    %1486 = vmatprep.subr.mxu0 0.0
    %1487 = vmatpush1.msra.mxu0 0.0
    %1488 = vmatprep.subr.mxu0 0.0
    %1489 = vmatpush1.msra.mxu0 0.0
    %1490 = vmatprep.subr.mxu0 0.0
    %1491 = vmatpush1.msra.mxu0 0.0
    %1492 = vmatprep.subr.mxu0 0.0
    %1493 = vmatpush1.msra.mxu0 0.0
    %1494 = vmatprep.subr.mxu0 0.0
    %1495 = vmatpush1.msra.mxu0 0.0
    %1496 = vmatprep.subr.mxu0 0.0
    %1497 = vmatpush1.msra.mxu0 0.0
    %1498 = vmatprep.subr.mxu0 0.0
    %1499 = vmatpush1.msra.mxu0 0.0
    %1500 = vmatprep.subr.mxu0 0.0
    %1501 = vmatpush1.msra.mxu0 0.0
    %1502 = vmatprep.subr.mxu0 0.0
    %1503 = vmatpush1.msra.mxu0 0.0
    %1504 = vmatprep.subr.mxu0 0.0
    %1505 = vmatpush1.msra.mxu0 0.0
    %1506 = vmatprep.subr.mxu0 0.0
    %1507 = vmatpush1.msra.mxu0 0.0
    %1508 = vmatprep.subr.mxu0 0.0
    %1509 = vmatpush1.msra.mxu0 0.0
    %1510 = vmatprep.subr.mxu0 0.0
    %1511 = vmatpush1.msra.mxu0 0.0
    %1512 = vmatprep.subr.mxu0 0.0
    %1513 = vmatpush1.msra.mxu0 0.0
    %1514 = vmatprep.subr.mxu0 0.0
    %1515 = vmatpush1.msra.mxu0 0.0
    %1516 = vmatprep.subr.mxu0 0.0
    %1517 = vmatpush1.msra.mxu0 0.0
    %1518 = vmatprep.subr.mxu0 0.0
    %1519 = vmatpush1.msra.mxu0 0.0
    %1520 = vmatprep.subr.mxu0 0.0
    %1521 = vmatpush1.msra.mxu0 0.0
    %1522 = vmatprep.subr.mxu0 0.0
    %1523 = vmatpush1.msra.mxu0 0.0
    %1524 = vmatprep.subr.mxu0 0.0
    %1525 = vmatpush1.msra.mxu0 0.0
    %1526 = vmatprep.subr.mxu0 0.0
    %1527 = vmatpush1.msra.mxu0 0.0
    %1528 = vmatprep.subr.mxu0 0.0
    %1529 = vmatpush1.msra.mxu0 0.0
    %1530 = vmatprep.subr.mxu0 0.0
    %1531 = vmatpush1.msra.mxu0 0.0
    %1532 = vmatprep.subr.mxu0 0.0
    %1533 = vmatpush1.msra.mxu0 0.0
    %1534 = vmatprep.subr.mxu0 0.0
    %1535 = vmatpush1.msra.mxu0 0.0
    %1536 = vmatprep.mubr.f32.mxu0 0.0
    %1537 = vmatmul.mubr.f32.gmra.mrb[0].mxu0 %v1470
    %v1538 = vpop.f32.mrb[0].mxu0
    %v1539 = vadd.f32 %v1319, %v1538
    %v1540 = vpop.f32.mrb[0].mxu0
    %1541 = vdwg.mxu0
    %v1542 = vadd.f32 %v1539, %v1460
    %v1543 = vxor.u32 %v1542, 2147483648
    %v1544 = vmul.f32 %v1543, 1.442695
    %v1545 = vpow.pop %v1544
    %v1546 = vadd.f32 %v1545, 1.0
    %v1547 = vrcp.pop %v1546
    %v1548 = vmul.f32 1.0, %v1547
    %v1549 = vadd.f32 %v1460, %v1219
    %1551 = vrot.lane.b32.xlu0 %v1549, 32
    %v1552 = vpop.permute.xlu0 %1551
    %v1554 = vmul.f32 %v1548, %v1552
    %1556 = vrot.lane.b32.xlu0 %v1554, 64
    %v1557 = vpop.permute.xlu0 %1556
    %v1559 = vadd.f32 %v1542, %v1557
    %v1560 = vtanh.pop %v1559
    %v1561 = vsub.f32 1.0, %v1548
    %1563 = vrot.lane.b32.xlu0 %v1560, 96
    %v1564 = vpop.permute.xlu0 %1563
    %v1566 = vmul.f32 %v1561, %v1564
    %v1567 = vmul.f32 %v1548, %v1417
    %v1568 = vadd.f32 %v1566, %v1567
    %v1569 = vpack.c.bf16 %v1568, %v1568
    %1571 = vrot.lane.b32.xlu0 %v1569, 96
    %v1572 = vpop.permute.xlu0 %1571
    %v1574 = vsel %vm311, %v1572, 0
    %1576 = vmatprep.subr.bf16.mxu0 %v1260
    %1577 = vmatpush1.bf16.msra.mxu0 %v1259
    %1578 = vmatprep.subr.bf16.mxu0 %v1262
    %1579 = vmatpush1.bf16.msra.mxu0 %v1261
    %1580 = vmatprep.subr.bf16.mxu0 0
    %1581 = vmatpush1.bf16.msra.mxu0 0
    %1582 = vmatprep.subr.bf16.mxu0 0
    %1583 = vmatpush1.bf16.msra.mxu0 0
    %1584 = vmatprep.subr.bf16.mxu0 0
    %1585 = vmatpush1.bf16.msra.mxu0 0
    %1586 = vmatprep.subr.bf16.mxu0 0
    %1587 = vmatpush1.bf16.msra.mxu0 0
    %1588 = vmatprep.subr.bf16.mxu0 0
    %1589 = vmatpush1.bf16.msra.mxu0 0
    %1590 = vmatprep.subr.bf16.mxu0 0
    %1591 = vmatpush1.bf16.msra.mxu0 0
    %1592 = vmatprep.subr.bf16.mxu0 0
    %1593 = vmatpush1.bf16.msra.mxu0 0
    %1594 = vmatprep.subr.bf16.mxu0 0
    %1595 = vmatpush1.bf16.msra.mxu0 0
    %1596 = vmatprep.subr.bf16.mxu0 0
    %1597 = vmatpush1.bf16.msra.mxu0 0
    %1598 = vmatprep.subr.bf16.mxu0 0
    %1599 = vmatpush1.bf16.msra.mxu0 0
    %1600 = vmatprep.subr.bf16.mxu0 0
    %1601 = vmatpush1.bf16.msra.mxu0 0
    %1602 = vmatprep.subr.bf16.mxu0 0
    %1603 = vmatpush1.bf16.msra.mxu0 0
    %1604 = vmatprep.subr.bf16.mxu0 0
    %1605 = vmatpush1.bf16.msra.mxu0 0
    %1606 = vmatprep.subr.bf16.mxu0 0
    %1607 = vmatpush1.bf16.msra.mxu0 0
    %1608 = vmatprep.mubr.bf16.mxu0 0
    %1609 = vmatmul.mubr.bf16.gmra.mrb[0].mxu0 %v1574
    %v1610 = vpop.f32.mrb[0].mxu0
    %v1611 = vadd.f32 0.0, %v1610
    %v1612 = vpop.f32.mrb[0].mxu0
    %v1613 = vadd.f32 0.0, %v1612
    %v1614 = vpop.f32.mrb[0].mxu0
    %v1615 = vpop.f32.mrb[0].mxu0
    %1616 = vdwg.mxu0
    %v1617 = vadd.f32 %v1613, %v90
    %v1618 = vadd.f32 %v1617, %v1467
    %1619 = vst.msk [vmem:[%s14 + $0x4] sm:$0x3] %vm1313, %v1618
    %v1621 = vsel %vm188, %v1467, 0
    %1623 = vmatprep.subr.mxu0 0.0
    %1624 = vmatpush1.msra.mxu0 %v58
    %1625 = vmatprep.subr.mxu0 0.0
    %1626 = vmatpush1.msra.mxu0 %v59
    %1627 = vmatprep.subr.mxu0 0.0
    %1628 = vmatpush1.msra.mxu0 0.0
    %1629 = vmatprep.subr.mxu0 0.0
    %1630 = vmatpush1.msra.mxu0 0.0
    %1631 = vmatprep.subr.mxu0 0.0
    %1632 = vmatpush1.msra.mxu0 0.0
    %1633 = vmatprep.subr.mxu0 0.0
    %1634 = vmatpush1.msra.mxu0 0.0
    %1635 = vmatprep.subr.mxu0 0.0
    %1636 = vmatpush1.msra.mxu0 0.0
    %1637 = vmatprep.subr.mxu0 0.0
    %1638 = vmatpush1.msra.mxu0 0.0
    %1639 = vmatprep.subr.mxu0 0.0
    %1640 = vmatpush1.msra.mxu0 0.0
    %1641 = vmatprep.subr.mxu0 0.0
    %1642 = vmatpush1.msra.mxu0 0.0
    %1643 = vmatprep.subr.mxu0 0.0
    %1644 = vmatpush1.msra.mxu0 0.0
    %1645 = vmatprep.subr.mxu0 0.0
    %1646 = vmatpush1.msra.mxu0 0.0
    %1647 = vmatprep.subr.mxu0 0.0
    %1648 = vmatpush1.msra.mxu0 0.0
    %1649 = vmatprep.subr.mxu0 0.0
    %1650 = vmatpush1.msra.mxu0 0.0
    %1651 = vmatprep.subr.mxu0 0.0
    %1652 = vmatpush1.msra.mxu0 0.0
    %1653 = vmatprep.subr.mxu0 0.0
    %1654 = vmatpush1.msra.mxu0 0.0
    %1655 = vmatprep.subr.mxu0 0.0
    %1656 = vmatpush1.msra.mxu0 0.0
    %1657 = vmatprep.subr.mxu0 0.0
    %1658 = vmatpush1.msra.mxu0 0.0
    %1659 = vmatprep.subr.mxu0 0.0
    %1660 = vmatpush1.msra.mxu0 0.0
    %1661 = vmatprep.subr.mxu0 0.0
    %1662 = vmatpush1.msra.mxu0 0.0
    %1663 = vmatprep.subr.mxu0 0.0
    %1664 = vmatpush1.msra.mxu0 0.0
    %1665 = vmatprep.subr.mxu0 0.0
    %1666 = vmatpush1.msra.mxu0 0.0
    %1667 = vmatprep.subr.mxu0 0.0
    %1668 = vmatpush1.msra.mxu0 0.0
    %1669 = vmatprep.subr.mxu0 0.0
    %1670 = vmatpush1.msra.mxu0 0.0
    %1671 = vmatprep.subr.mxu0 0.0
    %1672 = vmatpush1.msra.mxu0 0.0
    %1673 = vmatprep.subr.mxu0 0.0
    %1674 = vmatpush1.msra.mxu0 0.0
    %1675 = vmatprep.subr.mxu0 0.0
    %1676 = vmatpush1.msra.mxu0 0.0
    %1677 = vmatprep.subr.mxu0 0.0
    %1678 = vmatpush1.msra.mxu0 0.0
    %1679 = vmatprep.subr.mxu0 0.0
    %1680 = vmatpush1.msra.mxu0 0.0
    %1681 = vmatprep.subr.mxu0 0.0
    %1682 = vmatpush1.msra.mxu0 0.0
    %1683 = vmatprep.subr.mxu0 0.0
    %1684 = vmatpush1.msra.mxu0 0.0
    %1685 = vmatprep.subr.mxu0 0.0
    %1686 = vmatpush1.msra.mxu0 0.0
    %1687 = vmatprep.mubr.f32.mxu0 0.0
    %1688 = vmatmul.mubr.f32.gmra.mrb[0].mxu0 %v1621
    %v1689 = vpop.f32.mrb[0].mxu0
    %v1690 = vadd.f32 %v1319, %v1689
    %v1691 = vpop.f32.mrb[0].mxu0
    %1692 = vdwg.mxu0
    %v1693 = vadd.f32 %v1690, %v1611
    %v1694 = vxor.u32 %v1693, 2147483648
    %v1695 = vmul.f32 %v1694, 1.442695
    %v1696 = vpow.pop %v1695
    %v1697 = vadd.f32 %v1696, 1.0
    %v1698 = vrcp.pop %v1697
    %v1699 = vmul.f32 1.0, %v1698
    %v1700 = vadd.f32 %v1611, %v1219
    %1702 = vrot.lane.b32.xlu0 %v1700, 32
    %v1703 = vpop.permute.xlu0 %1702
    %v1705 = vmul.f32 %v1699, %v1703
    %1707 = vrot.lane.b32.xlu0 %v1705, 64
    %v1708 = vpop.permute.xlu0 %1707
    %v1710 = vadd.f32 %v1693, %v1708
    %v1711 = vtanh.pop %v1710
    %v1712 = vsub.f32 1.0, %v1699
    %1714 = vrot.lane.b32.xlu0 %v1711, 96
    %v1715 = vpop.permute.xlu0 %1714
    %v1717 = vmul.f32 %v1712, %v1715
    %v1718 = vmul.f32 %v1699, %v1568
    %v1719 = vadd.f32 %v1717, %v1718
    %v1720 = vpack.c.bf16 %v1719, %v1719
    %1722 = vrot.lane.b32.xlu0 %v1720, 96
    %v1723 = vpop.permute.xlu0 %1722
    %v1725 = vsel %vm311, %v1723, 0
    %1727 = vmatprep.subr.bf16.mxu0 %v1260
    %1728 = vmatpush1.bf16.msra.mxu0 %v1259
    %1729 = vmatprep.subr.bf16.mxu0 %v1262
    %1730 = vmatpush1.bf16.msra.mxu0 %v1261
    %1731 = vmatprep.subr.bf16.mxu0 0
    %1732 = vmatpush1.bf16.msra.mxu0 0
    %1733 = vmatprep.subr.bf16.mxu0 0
    %1734 = vmatpush1.bf16.msra.mxu0 0
    %1735 = vmatprep.subr.bf16.mxu0 0
    %1736 = vmatpush1.bf16.msra.mxu0 0
    %1737 = vmatprep.subr.bf16.mxu0 0
    %1738 = vmatpush1.bf16.msra.mxu0 0
    %1739 = vmatprep.subr.bf16.mxu0 0
    %1740 = vmatpush1.bf16.msra.mxu0 0
    %1741 = vmatprep.subr.bf16.mxu0 0
    %1742 = vmatpush1.bf16.msra.mxu0 0
    %1743 = vmatprep.subr.bf16.mxu0 0
    %1744 = vmatpush1.bf16.msra.mxu0 0
    %1745 = vmatprep.subr.bf16.mxu0 0
    %1746 = vmatpush1.bf16.msra.mxu0 0
    %1747 = vmatprep.subr.bf16.mxu0 0
    %1748 = vmatpush1.bf16.msra.mxu0 0
    %1749 = vmatprep.subr.bf16.mxu0 0
    %1750 = vmatpush1.bf16.msra.mxu0 0
    %1751 = vmatprep.subr.bf16.mxu0 0
    %1752 = vmatpush1.bf16.msra.mxu0 0
    %1753 = vmatprep.subr.bf16.mxu0 0
    %1754 = vmatpush1.bf16.msra.mxu0 0
    %1755 = vmatprep.subr.bf16.mxu0 0
    %1756 = vmatpush1.bf16.msra.mxu0 0
    %1757 = vmatprep.subr.bf16.mxu0 0
    %1758 = vmatpush1.bf16.msra.mxu0 0
    %1759 = vmatprep.mubr.bf16.mxu0 0
    %1760 = vmatmul.mubr.bf16.gmra.mrb[0].mxu0 %v1725
    %v1761 = vpop.f32.mrb[0].mxu0
    %v1762 = vadd.f32 0.0, %v1761
    %v1763 = vpop.f32.mrb[0].mxu0
    %v1764 = vadd.f32 0.0, %v1763
    %v1765 = vpop.f32.mrb[0].mxu0
    %v1766 = vpop.f32.mrb[0].mxu0
    %1767 = vdwg.mxu0
    %v1768 = vadd.f32 %v1764, %v90
    %v1769 = vadd.f32 %v1768, %v1618
    %1770 = vst.msk [vmem:[%s14 + $0x6] sm:$0x3] %vm1313, %v1769
    %v1772 = vsel %vm188, %v1618, 0
    %1774 = vmatprep.subr.mxu0 0.0
    %1775 = vmatpush1.msra.mxu0 %v58
    %1776 = vmatprep.subr.mxu0 0.0
    %1777 = vmatpush1.msra.mxu0 %v59
    %1778 = vmatprep.subr.mxu0 0.0
    %1779 = vmatpush1.msra.mxu0 0.0
    %1780 = vmatprep.subr.mxu0 0.0
    %1781 = vmatpush1.msra.mxu0 0.0
    %1782 = vmatprep.subr.mxu0 0.0
    %1783 = vmatpush1.msra.mxu0 0.0
    %1784 = vmatprep.subr.mxu0 0.0
    %1785 = vmatpush1.msra.mxu0 0.0
    %1786 = vmatprep.subr.mxu0 0.0
    %1787 = vmatpush1.msra.mxu0 0.0
    %1788 = vmatprep.subr.mxu0 0.0
    %1789 = vmatpush1.msra.mxu0 0.0
    %1790 = vmatprep.subr.mxu0 0.0
    %1791 = vmatpush1.msra.mxu0 0.0
    %1792 = vmatprep.subr.mxu0 0.0
    %1793 = vmatpush1.msra.mxu0 0.0
    %1794 = vmatprep.subr.mxu0 0.0
    %1795 = vmatpush1.msra.mxu0 0.0
    %1796 = vmatprep.subr.mxu0 0.0
    %1797 = vmatpush1.msra.mxu0 0.0
    %1798 = vmatprep.subr.mxu0 0.0
    %1799 = vmatpush1.msra.mxu0 0.0
    %1800 = vmatprep.subr.mxu0 0.0
    %1801 = vmatpush1.msra.mxu0 0.0
    %1802 = vmatprep.subr.mxu0 0.0
    %1803 = vmatpush1.msra.mxu0 0.0
    %1804 = vmatprep.subr.mxu0 0.0
    %1805 = vmatpush1.msra.mxu0 0.0
    %1806 = vmatprep.subr.mxu0 0.0
    %1807 = vmatpush1.msra.mxu0 0.0
    %1808 = vmatprep.subr.mxu0 0.0
    %1809 = vmatpush1.msra.mxu0 0.0
    %1810 = vmatprep.subr.mxu0 0.0
    %1811 = vmatpush1.msra.mxu0 0.0
    %1812 = vmatprep.subr.mxu0 0.0
    %1813 = vmatpush1.msra.mxu0 0.0
    %1814 = vmatprep.subr.mxu0 0.0
    %1815 = vmatpush1.msra.mxu0 0.0
    %1816 = vmatprep.subr.mxu0 0.0
    %1817 = vmatpush1.msra.mxu0 0.0
    %1818 = vmatprep.subr.mxu0 0.0
    %1819 = vmatpush1.msra.mxu0 0.0
    %1820 = vmatprep.subr.mxu0 0.0
    %1821 = vmatpush1.msra.mxu0 0.0
    %1822 = vmatprep.subr.mxu0 0.0
    %1823 = vmatpush1.msra.mxu0 0.0
    %1824 = vmatprep.subr.mxu0 0.0
    %1825 = vmatpush1.msra.mxu0 0.0
    %1826 = vmatprep.subr.mxu0 0.0
    %1827 = vmatpush1.msra.mxu0 0.0
    %1828 = vmatprep.subr.mxu0 0.0
    %1829 = vmatpush1.msra.mxu0 0.0
    %1830 = vmatprep.subr.mxu0 0.0
    %1831 = vmatpush1.msra.mxu0 0.0
    %1832 = vmatprep.subr.mxu0 0.0
    %1833 = vmatpush1.msra.mxu0 0.0
    %1834 = vmatprep.subr.mxu0 0.0
    %1835 = vmatpush1.msra.mxu0 0.0
    %1836 = vmatprep.subr.mxu0 0.0
    %1837 = vmatpush1.msra.mxu0 0.0
    %1838 = vmatprep.mubr.f32.mxu0 0.0
    %1839 = vmatmul.mubr.f32.gmra.mrb[0].mxu0 %v1772
    %v1840 = vpop.f32.mrb[0].mxu0
    %v1841 = vadd.f32 %v1319, %v1840
    %v1842 = vpop.f32.mrb[0].mxu0
    %1843 = vdwg.mxu0
    %v1844 = vadd.f32 %v1841, %v1762
    %v1845 = vxor.u32 %v1844, 2147483648
    %v1846 = vmul.f32 %v1845, 1.442695
    %v1847 = vpow.pop %v1846
    %v1848 = vadd.f32 %v1847, 1.0
    %v1849 = vrcp.pop %v1848
    %v1850 = vmul.f32 1.0, %v1849
    %v1851 = vadd.f32 %v1762, %v1219
    %1853 = vrot.lane.b32.xlu0 %v1851, 32
    %v1854 = vpop.permute.xlu0 %1853
    %v1856 = vmul.f32 %v1850, %v1854
    %1858 = vrot.lane.b32.xlu0 %v1856, 64
    %v1859 = vpop.permute.xlu0 %1858
    %v1861 = vadd.f32 %v1844, %v1859
    %v1862 = vtanh.pop %v1861
    %v1863 = vsub.f32 1.0, %v1850
    %1865 = vrot.lane.b32.xlu0 %v1862, 96
    %v1866 = vpop.permute.xlu0 %1865
    %v1868 = vmul.f32 %v1863, %v1866
    %v1869 = vmul.f32 %v1850, %v1719
    %v1870 = vadd.f32 %v1868, %v1869
    %v1871 = vpack.c.bf16 %v1870, %v1870
    %1873 = vrot.lane.b32.xlu0 %v1871, 96
    %v1874 = vpop.permute.xlu0 %1873
    %v1876 = vsel %vm311, %v1874, 0
    %1878 = vmatprep.subr.bf16.mxu0 %v1260
    %1879 = vmatpush1.bf16.msra.mxu0 %v1259
    %1880 = vmatprep.subr.bf16.mxu0 %v1262
    %1881 = vmatpush1.bf16.msra.mxu0 %v1261
    %1882 = vmatprep.subr.bf16.mxu0 0
    %1883 = vmatpush1.bf16.msra.mxu0 0
    %1884 = vmatprep.subr.bf16.mxu0 0
    %1885 = vmatpush1.bf16.msra.mxu0 0
    %1886 = vmatprep.subr.bf16.mxu0 0
    %1887 = vmatpush1.bf16.msra.mxu0 0
    %1888 = vmatprep.subr.bf16.mxu0 0
    %1889 = vmatpush1.bf16.msra.mxu0 0
    %1890 = vmatprep.subr.bf16.mxu0 0
    %1891 = vmatpush1.bf16.msra.mxu0 0
    %1892 = vmatprep.subr.bf16.mxu0 0
    %1893 = vmatpush1.bf16.msra.mxu0 0
    %1894 = vmatprep.subr.bf16.mxu0 0
    %1895 = vmatpush1.bf16.msra.mxu0 0
    %1896 = vmatprep.subr.bf16.mxu0 0
    %1897 = vmatpush1.bf16.msra.mxu0 0
    %1898 = vmatprep.subr.bf16.mxu0 0
    %1899 = vmatpush1.bf16.msra.mxu0 0
    %1900 = vmatprep.subr.bf16.mxu0 0
    %1901 = vmatpush1.bf16.msra.mxu0 0
    %1902 = vmatprep.subr.bf16.mxu0 0
    %1903 = vmatpush1.bf16.msra.mxu0 0
    %1904 = vmatprep.subr.bf16.mxu0 0
    %1905 = vmatpush1.bf16.msra.mxu0 0
    %1906 = vmatprep.subr.bf16.mxu0 0
    %1907 = vmatpush1.bf16.msra.mxu0 0
    %1908 = vmatprep.subr.bf16.mxu0 0
    %1909 = vmatpush1.bf16.msra.mxu0 0
    %1910 = vmatprep.mubr.bf16.mxu0 0
    %1911 = vmatmul.mubr.bf16.gmra.mrb[0].mxu0 %v1876
    %v1912 = vpop.f32.mrb[0].mxu0
    %v1913 = vpop.f32.mrb[0].mxu0
    %v1914 = vadd.f32 0.0, %v1913
    %v1915 = vpop.f32.mrb[0].mxu0
    %v1916 = vpop.f32.mrb[0].mxu0
    %1917 = vdwg.mxu0
    %v1918 = vadd.f32 %v1914, %v90
    %v1919 = vadd.f32 %v1918, %v1769
    %1920 = vst.msk [vmem:[%s14 + $0x8] sm:$0x3] %vm1313, %v1919
    // Predicated region
    $region54: #{encoder_decoder.1} parent=1 // pred_check
      _
    $region55: #{encoder_decoder.1} parent=1 // pred_check_branch
      %1922 = sbr.rel (0) target = $region57
    $region56: #{encoder_decoder.1} parent=1 // pred_region
      %s1924 = ssub.s32 256, 256
      %1925 = vsyncadd [#allocation4], %s1924
      %s1926 = sshll.u32 [#allocation3], 4
      %s1927 = int_to_ptr.vmem [resolvable:$true] %s1926
      %1932 = dma.vmem_to_hbm [thread:$0]  %s1927, 256, %s13, [#allocation4], 128, 128, 8
    $region57: #{encoder_decoder.1} parent=1 // pred_fallthru
      _
    // Predicated region
    $region58: #{encoder_decoder.1} parent=1 // pred_check
      _
    $region59: #{encoder_decoder.1} parent=1 // pred_check_branch
      %1934 = sbr.rel (0) target = $region61
    $region60: #{encoder_decoder.1} parent=1 // pred_region
      _
    $region61: #{encoder_decoder.1} parent=1 // pred_fallthru
      _
    // Predicated region
    $region62: #{encoder_decoder.1} parent=1 // pred_check
      _
    $region63: #{encoder_decoder.1} parent=1 // pred_check_branch
      %1936 = sbr.rel (0) target = $region65
    $region64: #{encoder_decoder.1} parent=1 // pred_region
      %1937 = dma.done [#allocation4], 256
    $region65: #{encoder_decoder.1} parent=1 // pred_fallthru
      _
    // Predicated region
    $region66: #{encoder_decoder.1} parent=1 // pred_check
      _
    $region67: #{encoder_decoder.1} parent=1 // pred_check_branch
      %1939 = sbr.rel (0) target = $region69
    $region68: #{encoder_decoder.1} parent=1 // pred_region
      _
    $region69: #{encoder_decoder.1} parent=1 // pred_fallthru
      _
    %1940 = vsyncpa [#allocation4], 1

</llo_original>
